<compile_context>
chip_gen: v6e
topology: v6e:2x2x1
jax: 0.10.0
libtpu: 0.0.40
codegen_flags: <defaults>
</compile_context>

<pallas_src>
import functools

import numpy as np
import jax
import jax.numpy as jnp
from jax import lax
from jax.experimental import pallas as pl
from jax.experimental.pallas import tpu as pltpu

NUM_HEADS = 2


def _layernorm(x, gamma, beta, eps=1e-5):
    # PyTorch LayerNorm: biased variance over the last dim, eps inside rsqrt.
    mean = jnp.mean(x, axis=-1, keepdims=True)
    var = jnp.mean((x - mean) ** 2, axis=-1, keepdims=True)
    return (x - mean) * lax.rsqrt(var + eps) * gamma + beta


# ---------------------------------------------------------------------------
# Single fused kernel: one batch element per grid step (parallel over batch).
# ---------------------------------------------------------------------------
def fused_layer_kernel(x_ref, x2_ref, wqkv_ref, bqkv_ref, wp_ref, bp_ref,
                       mask_ref, sel_ref,
                       g1_ref, b1_ref, w1_ref, bb1_ref, gm_ref, bm_ref,
                       w2_ref, bb2_ref, g2_ref, b2_ref, o_ref,
                       *, seq, embed, num_heads, scale):
    S, E, H = seq, embed, num_heads
    Dh = E // H
    nblk = E // S  # proj fold factor (requires S | E, checked in the wrapper)

    # ---- fused Q/K/V projection, directly in head-split layout -----------
    # Row r = h*S + s of `qkv` holds   q[b,h,s,:] | k[b,h,s,:] | v[b,h,s,:]
    # thanks to the JAX-side re-layout of x (x2) and the QKV weights.
    qkv = jnp.dot(x2_ref[...], wqkv_ref[...],
                  preferred_element_type=jnp.float32) + bqkv_ref[...]   # (H*S, 3*Dh)

    # ---- attention per head (H is tiny -> Python-unrolled) ---------------
    #   align = k @ q^T * scale ; att = softmax(align, -1) ; m_h = v^T @ att
    m_blocks = []
    for h in range(H):
        rows = slice(h * S, (h + 1) * S)
        q_h = qkv[rows, 0:Dh]                                   # (S, Dh)
        k_h = qkv[rows, Dh:2 * Dh]                              # (S, Dh)
        v_h = qkv[rows, 2 * Dh:3 * Dh]                          # (S, Dh)
        align = lax.dot_general(k_h, q_h, (((1,), (1,)), ((), ())),
                                preferred_element_type=jnp.float32) * scale
        align = align - jnp.max(align, axis=-1, keepdims=True)
        e = jnp.exp(align)
        att = e * pl.reciprocal(jnp.sum(e, axis=-1, keepdims=True),
                                approx=False)                   # exact softmax
        # Per-head "dataload" block, PyTorch layout: (Dh, S) = v^T @ att.
        m_blocks.append(
            lax.dot_general(v_h, att, (((0,), (0,)), ((), ())),
                            preferred_element_type=jnp.float32))
    m_cat = jnp.concatenate(m_blocks, axis=0)                   # (E, S)

    # ---- PyTorch (B,H,Dh,S)->(B,S,E) flatten == m_cat.reshape(S, E) -------
    # Realized with a lane concat + 0/1 mask + one tiny MXU matmul against
    # precomputed constants (no sublane->lane reshape inside the kernel):
    #   dataload[s, c] = m_cat[s*nblk + c//S, c%S]
    #                  = sum_r sel[s, r] * m_tiled[r, c] * mask[r, c]
    m_tiled = jnp.concatenate([m_cat] * nblk, axis=1)           # (E, E)
    dataload = jnp.dot(sel_ref[...], m_tiled * mask_ref[...],
                       preferred_element_type=jnp.float32)      # (S, E)

    # ---- output projection + bias + residual + LN1 -----------------------
    a = (jnp.dot(dataload, wp_ref[...], preferred_element_type=jnp.float32)
         + bp_ref[...] + x_ref[...])
    attn_out = _layernorm(a, g1_ref[...], b1_ref[...])

    # ---- MLP: Linear -> ReLU -> LayerNorm(FF) -> Linear, residual + LN2 ---
    hmid = jnp.maximum(
        jnp.dot(attn_out, w1_ref[...], preferred_element_type=jnp.float32)
        + bb1_ref[...], 0.0)                                    # (S, FF)
    hn = _layernorm(hmid, gm_ref[...], bm_ref[...])
    mlp_out = jnp.dot(hn, w2_ref[...], preferred_element_type=jnp.float32) + bb2_ref[...]
    o_ref[...] = _layernorm(mlp_out + attn_out, g2_ref[...], b2_ref[...])


# ---------------------------------------------------------------------------
# Wrapper: one-time JAX-level weight/input re-layout + the fused pallas_call.
# ---------------------------------------------------------------------------
def conv_transformer_encoder_layer(x, p, num_heads=NUM_HEADS):
    B, S, E = x.shape
    H = num_heads
    if E % H != 0:
        raise ValueError("embed_dim must be divisible by num_heads")
    Dh = E // H
    FF = p["w1"].shape[1]
    if E % S != 0:
        raise ValueError("fused proj fold requires seq to divide embed_dim")
    nblk = E // S
    scale = Dh ** (-0.5)

    # x2: block-diagonal expansion of x so that the QKV matmul with head-major
    # weights yields q/k/v already in the module's reshape-only head-split
    # layout.  Built once, outside the kernel.
    eye = jnp.eye(H, dtype=x.dtype)
    x2 = (x[:, :, None, None, :] * eye[None, None, :, :, None]
          ).reshape(B, H * S, H * E)                             # (B, H*S, H*E)

    def head_major_w(w):   # (E, E) -> (H*E, Dh)
        return jnp.concatenate([w[:, h * Dh:(h + 1) * Dh] for h in range(H)], axis=0)

    def head_major_b(b):   # (1, E) -> (H*S, Dh)
        return jnp.tile(b.reshape(H, Dh), (S, 1))

    wqkv = jnp.concatenate([head_major_w(p["wq"]), head_major_w(p["wk"]),
                            head_major_w(p["wv"])], axis=1)      # (H*E, 3*Dh)
    bqkv = jnp.concatenate([head_major_b(p["bq"]), head_major_b(p["bk"]),
                            head_major_b(p["bv"])], axis=1)      # (H*S, 3*Dh)

    # Constant selection matrices realizing dataload = m_cat.reshape(S, E):
    #   mask[r, c] = (c // S == r % nblk);  sel[s, r] = (r // nblk == s)
    r = jnp.arange(E)
    mask = ((r[None, :] // S) == (r[:, None] % nblk)).astype(jnp.float32)        # (E, E)
    sel = ((r[None, :] // nblk) == jnp.arange(S)[:, None]).astype(jnp.float32)   # (S, E)

    batch_spec = lambda shape: pl.BlockSpec(shape, lambda b: (b, 0, 0))
    full2d = lambda shape: pl.BlockSpec(shape, lambda b: (0, 0))

    kernel = functools.partial(fused_layer_kernel, seq=S, embed=E,
                               num_heads=H, scale=scale)

    out = pl.pallas_call(
        kernel,
        grid=(B,),
        in_specs=[
            batch_spec((None, S, E)),            # x (residual)
            batch_spec((None, H * S, H * E)),    # x2 (QKV input)
            full2d((H * E, 3 * Dh)),             # fused head-major QKV weight
            full2d((H * S, 3 * Dh)),             # fused head-major QKV bias
            full2d((E, E)), full2d((1, E)),      # proj weight / bias
            full2d((E, E)), full2d((S, E)),      # flatten-fold mask / sel
            full2d((1, E)), full2d((1, E)),      # ln1
            full2d((E, FF)), full2d((1, FF)),    # mlp linear 1
            full2d((1, FF)), full2d((1, FF)),    # mlp inner LayerNorm
            full2d((FF, E)), full2d((1, E)),     # mlp linear 2
            full2d((1, E)), full2d((1, E)),      # ln2
        ],
        out_specs=batch_spec((None, S, E)),
        out_shape=jax.ShapeDtypeStruct((B, S, E), jnp.float32),
        compiler_params=pltpu.CompilerParams(
            dimension_semantics=("parallel",)),  # lets v7x use both TensorCores
    )(x, x2, wqkv, bqkv,
      p["wp"], p["bp"], mask, sel,
      p["g1"], p["b1"], p["w1"], p["bb1"], p["gm"], p["bm"],
      p["w2"], p["bb2"], p["g2"], p["b2"])
    return out


# ---------------------------------------------------------------------------
# Pure-JAX reference (same math, same weights) for a sanity check.
# ---------------------------------------------------------------------------
def reference_forward(x, p, num_heads=NUM_HEADS):
    B, S, E = x.shape
    H = num_heads
    Dh = E // H
    scale = Dh ** (-0.5)
    q = (x @ p["wq"] + p["bq"]).reshape(B, H, S, Dh)
    k = (x @ p["wk"] + p["bk"]).reshape(B, H, S, Dh)
    v = (x @ p["wv"] + p["bv"]).reshape(B, H, S, Dh)
    align = jnp.einsum("bhsd,bhtd->bhst", k, q) * scale
    att = jax.nn.softmax(align, axis=-1)
    dataload = jnp.einsum("bhsd,bhst->bhdt", v, att).reshape(B, S, E)
    a = _layernorm(dataload @ p["wp"] + p["bp"] + x, p["g1"], p["b1"])
    h = jax.nn.relu(a @ p["w1"] + p["bb1"])
    hn = _layernorm(h, p["gm"], p["bm"])
    m = hn @ p["w2"] + p["bb2"]
    return _layernorm(m + a, p["g2"], p["b2"])


def init_params(key, E, FF):
    def lin(k, fin, fout):
        kw, kb = jax.random.split(k)
        bound = 1.0 / (fin ** 0.5)
        w = jax.random.uniform(kw, (fin, fout), jnp.float32, -bound, bound)
        b = jax.random.uniform(kb, (1, fout), jnp.float32, -bound, bound)
        return w, b

    ks = jax.random.split(key, 6)
    p = {}
    p["wq"], p["bq"] = lin(ks[0], E, E)
    p["wk"], p["bk"] = lin(ks[1], E, E)
    p["wv"], p["bv"] = lin(ks[2], E, E)
    p["wp"], p["bp"] = lin(ks[3], E, E)
    p["w1"], p["bb1"] = lin(ks[4], E, FF)
    p["w2"], p["bb2"] = lin(ks[5], FF, E)
    # LayerNorm params at PyTorch defaults (ones / zeros).
    p["g1"] = jnp.ones((1, E), jnp.float32)
    p["b1"] = jnp.zeros((1, E), jnp.float32)
    p["gm"] = jnp.ones((1, FF), jnp.float32)
    p["bm"] = jnp.zeros((1, FF), jnp.float32)
    p["g2"] = jnp.ones((1, E), jnp.float32)
    p["b2"] = jnp.zeros((1, E), jnp.float32)
    return p


if __name__ == "__main__":
    B, S, E, FF = 2, 8, 64, 256   # d_model=64, nheads=2, dim_feedforward=256
    key = jax.random.PRNGKey(0)
    kx, kp = jax.random.split(key)
    x = jax.random.normal(kx, (B, S, E), jnp.float32)
    params = init_params(kp, E, FF)

    layer = jax.jit(conv_transformer_encoder_layer)
    out = jax.block_until_ready(layer(x, params))
    ref = jax.block_until_ready(reference_forward(x, params))

    # Headroom only for the MXU's default-precision (bf16-multiply, f32-acc)
    # matmul path; a layout/permutation bug would produce O(1) errors.
    np.testing.assert_allclose(np.asarray(out), np.asarray(ref),
                               atol=5e-3, rtol=5e-3)

    print("KERNEL_OK")
</pallas_src>

<mosaic_0001>
module attributes {stable_mosaic.version = 11 : i64} {
  func.func @fused_layer_kernel(%arg0: i32, %arg1: memref<1x8x64xf32, #tpu.memory_space<vmem>>, %arg2: memref<1x16x128xf32, #tpu.memory_space<vmem>>, %arg3: memref<128x96xf32, #tpu.memory_space<vmem>>, %arg4: memref<16x96xf32, #tpu.memory_space<vmem>>, %arg5: memref<64x64xf32, #tpu.memory_space<vmem>>, %arg6: memref<1x64xf32, #tpu.memory_space<vmem>>, %arg7: memref<64x64xf32, #tpu.memory_space<vmem>>, %arg8: memref<8x64xf32, #tpu.memory_space<vmem>>, %arg9: memref<1x64xf32, #tpu.memory_space<vmem>>, %arg10: memref<1x64xf32, #tpu.memory_space<vmem>>, %arg11: memref<64x256xf32, #tpu.memory_space<vmem>>, %arg12: memref<1x256xf32, #tpu.memory_space<vmem>>, %arg13: memref<1x256xf32, #tpu.memory_space<vmem>>, %arg14: memref<1x256xf32, #tpu.memory_space<vmem>>, %arg15: memref<256x64xf32, #tpu.memory_space<vmem>>, %arg16: memref<1x64xf32, #tpu.memory_space<vmem>>, %arg17: memref<1x64xf32, #tpu.memory_space<vmem>>, %arg18: memref<1x64xf32, #tpu.memory_space<vmem>>, %arg19: memref<1x8x64xf32, #tpu.memory_space<vmem>>) attributes {dimension_semantics = [#tpu.dimension_semantics<parallel>], iteration_bounds = array<i64: 2>, scalar_prefetch = 0 : i64, scratch_operands = 0 : i64, tpu.core_type = #tpu.core_type<tc>, window_params = [{transform_indices = @transform_0, window_bounds = array<i64: 1, 8, 64>}, {transform_indices = @transform_1, window_bounds = array<i64: 1, 16, 128>}, {pipeline_mode = #tpu.pipeline_mode<synchronous>, transform_indices = @transform_2, window_bounds = array<i64: 128, 96>}, {pipeline_mode = #tpu.pipeline_mode<synchronous>, transform_indices = @transform_3, window_bounds = array<i64: 16, 96>}, {pipeline_mode = #tpu.pipeline_mode<synchronous>, transform_indices = @transform_4, window_bounds = array<i64: 64, 64>}, {pipeline_mode = #tpu.pipeline_mode<synchronous>, transform_indices = @transform_5, window_bounds = array<i64: 1, 64>}, {pipeline_mode = #tpu.pipeline_mode<synchronous>, transform_indices = @transform_6, window_bounds = array<i64: 64, 64>}, {pipeline_mode = #tpu.pipeline_mode<synchronous>, transform_indices = @transform_7, window_bounds = array<i64: 8, 64>}, {pipeline_mode = #tpu.pipeline_mode<synchronous>, transform_indices = @transform_8, window_bounds = array<i64: 1, 64>}, {pipeline_mode = #tpu.pipeline_mode<synchronous>, transform_indices = @transform_9, window_bounds = array<i64: 1, 64>}, {pipeline_mode = #tpu.pipeline_mode<synchronous>, transform_indices = @transform_10, window_bounds = array<i64: 64, 256>}, {pipeline_mode = #tpu.pipeline_mode<synchronous>, transform_indices = @transform_11, window_bounds = array<i64: 1, 256>}, {pipeline_mode = #tpu.pipeline_mode<synchronous>, transform_indices = @transform_12, window_bounds = array<i64: 1, 256>}, {pipeline_mode = #tpu.pipeline_mode<synchronous>, transform_indices = @transform_13, window_bounds = array<i64: 1, 256>}, {pipeline_mode = #tpu.pipeline_mode<synchronous>, transform_indices = @transform_14, window_bounds = array<i64: 256, 64>}, {pipeline_mode = #tpu.pipeline_mode<synchronous>, transform_indices = @transform_15, window_bounds = array<i64: 1, 64>}, {pipeline_mode = #tpu.pipeline_mode<synchronous>, transform_indices = @transform_16, window_bounds = array<i64: 1, 64>}, {pipeline_mode = #tpu.pipeline_mode<synchronous>, transform_indices = @transform_17, window_bounds = array<i64: 1, 64>}, {transform_indices = @transform_18, window_bounds = array<i64: 1, 8, 64>}]} {
    %c0 = arith.constant 0 : index
    %c0_0 = arith.constant 0 : index
    %c0_1 = arith.constant 0 : index
    %0 = vector.load %arg2[%c0, %c0_0, %c0_1] : memref<1x16x128xf32, #tpu.memory_space<vmem>>, vector<1x16x128xf32>
    %1 = vector.shape_cast %0 : vector<1x16x128xf32> to vector<16x128xf32>
    %c0_2 = arith.constant 0 : index
    %c0_3 = arith.constant 0 : index
    %2 = vector.load %arg3[%c0_2, %c0_3] : memref<128x96xf32, #tpu.memory_space<vmem>>, vector<128x96xf32>
    %cst = arith.constant dense<0.000000e+00> : vector<16x96xf32>
    %3 = tpu.matmul %1, %2, %cst {dimension_numbers = #tpu.dot_dimension_numbers<[1], [0], [0], [1], [0, 0, 1, 1], [], []>} : vector<16x128xf32>, vector<128x96xf32>, vector<16x96xf32> -> vector<16x96xf32>
    %c0_4 = arith.constant 0 : index
    %c0_5 = arith.constant 0 : index
    %4 = vector.load %arg4[%c0_4, %c0_5] : memref<16x96xf32, #tpu.memory_space<vmem>>, vector<16x96xf32>
    %5 = arith.addf %3, %4 : vector<16x96xf32>
    %6 = vector.extract_strided_slice %5 {offsets = [0, 0], sizes = [8, 32], strides = [1, 1]} : vector<16x96xf32> to vector<8x32xf32>
    %7 = vector.extract_strided_slice %5 {offsets = [0, 32], sizes = [8, 32], strides = [1, 1]} : vector<16x96xf32> to vector<8x32xf32>
    %8 = vector.extract_strided_slice %5 {offsets = [0, 64], sizes = [8, 32], strides = [1, 1]} : vector<16x96xf32> to vector<8x32xf32>
    %cst_6 = arith.constant dense<0.000000e+00> : vector<8x8xf32>
    %9 = tpu.matmul %7, %6, %cst_6 {dimension_numbers = #tpu.dot_dimension_numbers<[1], [1], [0], [0], [0, 0, 1, 0], [], []>} : vector<8x32xf32>, vector<8x32xf32>, vector<8x8xf32> -> vector<8x8xf32>
    %cst_7 = arith.constant 0.176776692 : f32
    %10 = vector.broadcast %cst_7 : f32 to vector<8x8xf32>
    %11 = arith.mulf %9, %10 : vector<8x8xf32>
    %cst_8 = arith.constant dense<0xFF800000> : vector<8xf32>
    %12 = vector.multi_reduction <maximumf>, %11, %cst_8 [1] : vector<8x8xf32> to vector<8xf32>
    %13 = vector.shape_cast %12 : vector<8xf32> to vector<8x1xf32>
    %14 = vector.broadcast %13 : vector<8x1xf32> to vector<8x8xf32>
    %15 = arith.subf %11, %14 : vector<8x8xf32>
    %16 = math.exp %15 : vector<8x8xf32>
    %cst_9 = arith.constant dense<0.000000e+00> : vector<8xf32>
    %17 = vector.multi_reduction <add>, %16, %cst_9 [1] : vector<8x8xf32> to vector<8xf32>
    %18 = vector.shape_cast %17 : vector<8xf32> to vector<8x1xf32>
    %19 = tpu.reciprocal %18 : vector<8x1xf32> -> vector<8x1xf32>
    %20 = vector.broadcast %19 : vector<8x1xf32> to vector<8x8xf32>
    %21 = arith.mulf %16, %20 : vector<8x8xf32>
    %cst_10 = arith.constant dense<0.000000e+00> : vector<32x8xf32>
    %22 = tpu.matmul %8, %21, %cst_10 {dimension_numbers = #tpu.dot_dimension_numbers<[0], [0], [1], [1], [0, 1, 1, 1], [], []>} : vector<8x32xf32>, vector<8x8xf32>, vector<32x8xf32> -> vector<32x8xf32>
    %23 = vector.extract_strided_slice %5 {offsets = [8, 0], sizes = [8, 32], strides = [1, 1]} : vector<16x96xf32> to vector<8x32xf32>
    %24 = vector.extract_strided_slice %5 {offsets = [8, 32], sizes = [8, 32], strides = [1, 1]} : vector<16x96xf32> to vector<8x32xf32>
    %25 = vector.extract_strided_slice %5 {offsets = [8, 64], sizes = [8, 32], strides = [1, 1]} : vector<16x96xf32> to vector<8x32xf32>
    %cst_11 = arith.constant dense<0.000000e+00> : vector<8x8xf32>
    %26 = tpu.matmul %24, %23, %cst_11 {dimension_numbers = #tpu.dot_dimension_numbers<[1], [1], [0], [0], [0, 0, 1, 0], [], []>} : vector<8x32xf32>, vector<8x32xf32>, vector<8x8xf32> -> vector<8x8xf32>
    %cst_12 = arith.constant 0.176776692 : f32
    %27 = vector.broadcast %cst_12 : f32 to vector<8x8xf32>
    %28 = arith.mulf %26, %27 : vector<8x8xf32>
    %cst_13 = arith.constant dense<0xFF800000> : vector<8xf32>
    %29 = vector.multi_reduction <maximumf>, %28, %cst_13 [1] : vector<8x8xf32> to vector<8xf32>
    %30 = vector.shape_cast %29 : vector<8xf32> to vector<8x1xf32>
    %31 = vector.broadcast %30 : vector<8x1xf32> to vector<8x8xf32>
    %32 = arith.subf %28, %31 : vector<8x8xf32>
    %33 = math.exp %32 : vector<8x8xf32>
    %cst_14 = arith.constant dense<0.000000e+00> : vector<8xf32>
    %34 = vector.multi_reduction <add>, %33, %cst_14 [1] : vector<8x8xf32> to vector<8xf32>
    %35 = vector.shape_cast %34 : vector<8xf32> to vector<8x1xf32>
    %36 = tpu.reciprocal %35 : vector<8x1xf32> -> vector<8x1xf32>
    %37 = vector.broadcast %36 : vector<8x1xf32> to vector<8x8xf32>
    %38 = arith.mulf %33, %37 : vector<8x8xf32>
    %cst_15 = arith.constant dense<0.000000e+00> : vector<32x8xf32>
    %39 = tpu.matmul %25, %38, %cst_15 {dimension_numbers = #tpu.dot_dimension_numbers<[0], [0], [1], [1], [0, 1, 1, 1], [], []>} : vector<8x32xf32>, vector<8x8xf32>, vector<32x8xf32> -> vector<32x8xf32>
    %40 = tpu.concatenate %22, %39 in 0 : vector<32x8xf32>, vector<32x8xf32> -> vector<64x8xf32>
    %41 = tpu.concatenate %40, %40, %40, %40, %40, %40, %40, %40 in 1 : vector<64x8xf32>, vector<64x8xf32>, vector<64x8xf32>, vector<64x8xf32>, vector<64x8xf32>, vector<64x8xf32>, vector<64x8xf32>, vector<64x8xf32> -> vector<64x64xf32>
    %c0_16 = arith.constant 0 : index
    %c0_17 = arith.constant 0 : index
    %42 = vector.load %arg8[%c0_16, %c0_17] : memref<8x64xf32, #tpu.memory_space<vmem>>, vector<8x64xf32>
    %c0_18 = arith.constant 0 : index
    %c0_19 = arith.constant 0 : index
    %43 = vector.load %arg7[%c0_18, %c0_19] : memref<64x64xf32, #tpu.memory_space<vmem>>, vector<64x64xf32>
    %44 = arith.mulf %41, %43 : vector<64x64xf32>
    %cst_20 = arith.constant dense<0.000000e+00> : vector<8x64xf32>
    %45 = tpu.matmul %42, %44, %cst_20 {dimension_numbers = #tpu.dot_dimension_numbers<[1], [0], [0], [1], [0, 0, 1, 1], [], []>} : vector<8x64xf32>, vector<64x64xf32>, vector<8x64xf32> -> vector<8x64xf32>
    %c0_21 = arith.constant 0 : index
    %c0_22 = arith.constant 0 : index
    %46 = vector.load %arg5[%c0_21, %c0_22] : memref<64x64xf32, #tpu.memory_space<vmem>>, vector<64x64xf32>
    %cst_23 = arith.constant dense<0.000000e+00> : vector<8x64xf32>
    %47 = tpu.matmul %45, %46, %cst_23 {dimension_numbers = #tpu.dot_dimension_numbers<[1], [0], [0], [1], [0, 0, 1, 1], [], []>} : vector<8x64xf32>, vector<64x64xf32>, vector<8x64xf32> -> vector<8x64xf32>
    %c0_24 = arith.constant 0 : index
    %c0_25 = arith.constant 0 : index
    %48 = vector.load %arg6[%c0_24, %c0_25] : memref<1x64xf32, #tpu.memory_space<vmem>>, vector<1x64xf32>
    %49 = vector.broadcast %48 : vector<1x64xf32> to vector<8x64xf32>
    %50 = arith.addf %47, %49 : vector<8x64xf32>
    %c0_26 = arith.constant 0 : index
    %c0_27 = arith.constant 0 : index
    %c0_28 = arith.constant 0 : index
    %51 = vector.load %arg1[%c0_26, %c0_27, %c0_28] : memref<1x8x64xf32, #tpu.memory_space<vmem>>, vector<1x8x64xf32>
    %52 = vector.shape_cast %51 : vector<1x8x64xf32> to vector<8x64xf32>
    %53 = arith.addf %50, %52 : vector<8x64xf32>
    %c0_29 = arith.constant 0 : index
    %c0_30 = arith.constant 0 : index
    %54 = vector.load %arg9[%c0_29, %c0_30] : memref<1x64xf32, #tpu.memory_space<vmem>>, vector<1x64xf32>
    %c0_31 = arith.constant 0 : index
    %c0_32 = arith.constant 0 : index
    %55 = vector.load %arg10[%c0_31, %c0_32] : memref<1x64xf32, #tpu.memory_space<vmem>>, vector<1x64xf32>
    %cst_33 = arith.constant dense<0.000000e+00> : vector<8xf32>
    %56 = vector.multi_reduction <add>, %53, %cst_33 [1] : vector<8x64xf32> to vector<8xf32>
    %57 = vector.shape_cast %56 : vector<8xf32> to vector<8x1xf32>
    %cst_34 = arith.constant 6.400000e+01 : f32
    %58 = vector.broadcast %cst_34 : f32 to vector<8x1xf32>
    %59 = arith.divf %57, %58 : vector<8x1xf32>
    %60 = vector.broadcast %59 : vector<8x1xf32> to vector<8x64xf32>
    %61 = arith.subf %53, %60 : vector<8x64xf32>
    %62 = arith.mulf %61, %61 : vector<8x64xf32>
    %cst_35 = arith.constant dense<0.000000e+00> : vector<8xf32>
    %63 = vector.multi_reduction <add>, %62, %cst_35 [1] : vector<8x64xf32> to vector<8xf32>
    %64 = vector.shape_cast %63 : vector<8xf32> to vector<8x1xf32>
    %cst_36 = arith.constant 6.400000e+01 : f32
    %65 = vector.broadcast %cst_36 : f32 to vector<8x1xf32>
    %66 = arith.divf %64, %65 : vector<8x1xf32>
    %67 = vector.broadcast %59 : vector<8x1xf32> to vector<8x64xf32>
    %68 = arith.subf %53, %67 : vector<8x64xf32>
    %cst_37 = arith.constant 9.99999974E-6 : f32
    %69 = vector.broadcast %cst_37 : f32 to vector<8x1xf32>
    %70 = arith.addf %66, %69 : vector<8x1xf32>
    %71 = math.rsqrt %70 : vector<8x1xf32>
    %72 = vector.broadcast %71 : vector<8x1xf32> to vector<8x64xf32>
    %73 = arith.mulf %68, %72 : vector<8x64xf32>
    %74 = vector.broadcast %54 : vector<1x64xf32> to vector<8x64xf32>
    %75 = arith.mulf %73, %74 : vector<8x64xf32>
    %76 = vector.broadcast %55 : vector<1x64xf32> to vector<8x64xf32>
    %77 = arith.addf %75, %76 : vector<8x64xf32>
    %c0_38 = arith.constant 0 : index
    %c0_39 = arith.constant 0 : index
    %78 = vector.load %arg11[%c0_38, %c0_39] : memref<64x256xf32, #tpu.memory_space<vmem>>, vector<64x256xf32>
    %cst_40 = arith.constant dense<0.000000e+00> : vector<8x256xf32>
    %79 = tpu.matmul %77, %78, %cst_40 {dimension_numbers = #tpu.dot_dimension_numbers<[1], [0], [0], [1], [0, 0, 1, 1], [], []>} : vector<8x64xf32>, vector<64x256xf32>, vector<8x256xf32> -> vector<8x256xf32>
    %c0_41 = arith.constant 0 : index
    %c0_42 = arith.constant 0 : index
    %80 = vector.load %arg12[%c0_41, %c0_42] : memref<1x256xf32, #tpu.memory_space<vmem>>, vector<1x256xf32>
    %81 = vector.broadcast %80 : vector<1x256xf32> to vector<8x256xf32>
    %82 = arith.addf %79, %81 : vector<8x256xf32>
    %cst_43 = arith.constant 0.000000e+00 : f32
    %83 = vector.broadcast %cst_43 : f32 to vector<8x256xf32>
    %84 = arith.maximumf %82, %83 : vector<8x256xf32>
    %c0_44 = arith.constant 0 : index
    %c0_45 = arith.constant 0 : index
    %85 = vector.load %arg13[%c0_44, %c0_45] : memref<1x256xf32, #tpu.memory_space<vmem>>, vector<1x256xf32>
    %c0_46 = arith.constant 0 : index
    %c0_47 = arith.constant 0 : index
    %86 = vector.load %arg14[%c0_46, %c0_47] : memref<1x256xf32, #tpu.memory_space<vmem>>, vector<1x256xf32>
    %cst_48 = arith.constant dense<0.000000e+00> : vector<8xf32>
    %87 = vector.multi_reduction <add>, %84, %cst_48 [1] : vector<8x256xf32> to vector<8xf32>
    %88 = vector.shape_cast %87 : vector<8xf32> to vector<8x1xf32>
    %cst_49 = arith.constant 2.560000e+02 : f32
    %89 = vector.broadcast %cst_49 : f32 to vector<8x1xf32>
    %90 = arith.divf %88, %89 : vector<8x1xf32>
    %91 = vector.broadcast %90 : vector<8x1xf32> to vector<8x256xf32>
    %92 = arith.subf %84, %91 : vector<8x256xf32>
    %93 = arith.mulf %92, %92 : vector<8x256xf32>
    %cst_50 = arith.constant dense<0.000000e+00> : vector<8xf32>
    %94 = vector.multi_reduction <add>, %93, %cst_50 [1] : vector<8x256xf32> to vector<8xf32>
    %95 = vector.shape_cast %94 : vector<8xf32> to vector<8x1xf32>
    %cst_51 = arith.constant 2.560000e+02 : f32
    %96 = vector.broadcast %cst_51 : f32 to vector<8x1xf32>
    %97 = arith.divf %95, %96 : vector<8x1xf32>
    %98 = vector.broadcast %90 : vector<8x1xf32> to vector<8x256xf32>
    %99 = arith.subf %84, %98 : vector<8x256xf32>
    %cst_52 = arith.constant 9.99999974E-6 : f32
    %100 = vector.broadcast %cst_52 : f32 to vector<8x1xf32>
    %101 = arith.addf %97, %100 : vector<8x1xf32>
    %102 = math.rsqrt %101 : vector<8x1xf32>
    %103 = vector.broadcast %102 : vector<8x1xf32> to vector<8x256xf32>
    %104 = arith.mulf %99, %103 : vector<8x256xf32>
    %105 = vector.broadcast %85 : vector<1x256xf32> to vector<8x256xf32>
    %106 = arith.mulf %104, %105 : vector<8x256xf32>
    %107 = vector.broadcast %86 : vector<1x256xf32> to vector<8x256xf32>
    %108 = arith.addf %106, %107 : vector<8x256xf32>
    %c0_53 = arith.constant 0 : index
    %c0_54 = arith.constant 0 : index
    %109 = vector.load %arg15[%c0_53, %c0_54] : memref<256x64xf32, #tpu.memory_space<vmem>>, vector<256x64xf32>
    %cst_55 = arith.constant dense<0.000000e+00> : vector<8x64xf32>
    %110 = tpu.matmul %108, %109, %cst_55 {dimension_numbers = #tpu.dot_dimension_numbers<[1], [0], [0], [1], [0, 0, 1, 1], [], []>} : vector<8x256xf32>, vector<256x64xf32>, vector<8x64xf32> -> vector<8x64xf32>
    %c0_56 = arith.constant 0 : index
    %c0_57 = arith.constant 0 : index
    %111 = vector.load %arg16[%c0_56, %c0_57] : memref<1x64xf32, #tpu.memory_space<vmem>>, vector<1x64xf32>
    %112 = vector.broadcast %111 : vector<1x64xf32> to vector<8x64xf32>
    %113 = arith.addf %110, %112 : vector<8x64xf32>
    %114 = arith.addf %113, %77 : vector<8x64xf32>
    %c0_58 = arith.constant 0 : index
    %c0_59 = arith.constant 0 : index
    %115 = vector.load %arg17[%c0_58, %c0_59] : memref<1x64xf32, #tpu.memory_space<vmem>>, vector<1x64xf32>
    %c0_60 = arith.constant 0 : index
    %c0_61 = arith.constant 0 : index
    %116 = vector.load %arg18[%c0_60, %c0_61] : memref<1x64xf32, #tpu.memory_space<vmem>>, vector<1x64xf32>
    %cst_62 = arith.constant dense<0.000000e+00> : vector<8xf32>
    %117 = vector.multi_reduction <add>, %114, %cst_62 [1] : vector<8x64xf32> to vector<8xf32>
    %118 = vector.shape_cast %117 : vector<8xf32> to vector<8x1xf32>
    %cst_63 = arith.constant 6.400000e+01 : f32
    %119 = vector.broadcast %cst_63 : f32 to vector<8x1xf32>
    %120 = arith.divf %118, %119 : vector<8x1xf32>
    %121 = vector.broadcast %120 : vector<8x1xf32> to vector<8x64xf32>
    %122 = arith.subf %114, %121 : vector<8x64xf32>
    %123 = arith.mulf %122, %122 : vector<8x64xf32>
    %cst_64 = arith.constant dense<0.000000e+00> : vector<8xf32>
    %124 = vector.multi_reduction <add>, %123, %cst_64 [1] : vector<8x64xf32> to vector<8xf32>
    %125 = vector.shape_cast %124 : vector<8xf32> to vector<8x1xf32>
    %cst_65 = arith.constant 6.400000e+01 : f32
    %126 = vector.broadcast %cst_65 : f32 to vector<8x1xf32>
    %127 = arith.divf %125, %126 : vector<8x1xf32>
    %128 = vector.broadcast %120 : vector<8x1xf32> to vector<8x64xf32>
    %129 = arith.subf %114, %128 : vector<8x64xf32>
    %cst_66 = arith.constant 9.99999974E-6 : f32
    %130 = vector.broadcast %cst_66 : f32 to vector<8x1xf32>
    %131 = arith.addf %127, %130 : vector<8x1xf32>
    %132 = math.rsqrt %131 : vector<8x1xf32>
    %133 = vector.broadcast %132 : vector<8x1xf32> to vector<8x64xf32>
    %134 = arith.mulf %129, %133 : vector<8x64xf32>
    %135 = vector.broadcast %115 : vector<1x64xf32> to vector<8x64xf32>
    %136 = arith.mulf %134, %135 : vector<8x64xf32>
    %137 = vector.broadcast %116 : vector<1x64xf32> to vector<8x64xf32>
    %138 = arith.addf %136, %137 : vector<8x64xf32>
    %c0_67 = arith.constant 0 : index
    %c0_68 = arith.constant 0 : index
    %c0_69 = arith.constant 0 : index
    %139 = vector.load %arg19[%c0_67, %c0_68, %c0_69] : memref<1x8x64xf32, #tpu.memory_space<vmem>>, vector<1x8x64xf32>
    %140 = vector.shape_cast %139 : vector<1x8x64xf32> to vector<8x64xf32>
    %141 = vector.shape_cast %138 : vector<8x64xf32> to vector<1x8x64xf32>
    tpu.vector_store %arg19[%c0_67, %c0_68, %c0_69], %141 {strides = array<i32>} : memref<1x8x64xf32, #tpu.memory_space<vmem>>, vector<1x8x64xf32>,
    return
  }
  func.func @transform_0(%arg0: i32) -> (i32, i32, i32) {
    %c0_i32 = arith.constant 0 : i32
    %c0_i32_0 = arith.constant 0 : i32
    %c0_i32_1 = arith.constant 0 : i32
    return %arg0, %c0_i32, %c0_i32_0 : i32, i32, i32
  }
  func.func @transform_1(%arg0: i32) -> (i32, i32, i32) {
    %c0_i32 = arith.constant 0 : i32
    %c0_i32_0 = arith.constant 0 : i32
    %c0_i32_1 = arith.constant 0 : i32
    return %arg0, %c0_i32, %c0_i32_0 : i32, i32, i32
  }
  func.func @transform_2(%arg0: i32) -> (i32, i32) {
    %c0_i32 = arith.constant 0 : i32
    %c0_i32_0 = arith.constant 0 : i32
    %c0_i32_1 = arith.constant 0 : i32
    return %c0_i32, %c0_i32_0 : i32, i32
  }
  func.func @transform_3(%arg0: i32) -> (i32, i32) {
    %c0_i32 = arith.constant 0 : i32
    %c0_i32_0 = arith.constant 0 : i32
    %c0_i32_1 = arith.constant 0 : i32
    return %c0_i32, %c0_i32_0 : i32, i32
  }
  func.func @transform_4(%arg0: i32) -> (i32, i32) {
    %c0_i32 = arith.constant 0 : i32
    %c0_i32_0 = arith.constant 0 : i32
    %c0_i32_1 = arith.constant 0 : i32
    return %c0_i32, %c0_i32_0 : i32, i32
  }
  func.func @transform_5(%arg0: i32) -> (i32, i32) {
    %c0_i32 = arith.constant 0 : i32
    %c0_i32_0 = arith.constant 0 : i32
    %c0_i32_1 = arith.constant 0 : i32
    return %c0_i32, %c0_i32_0 : i32, i32
  }
  func.func @transform_6(%arg0: i32) -> (i32, i32) {
    %c0_i32 = arith.constant 0 : i32
    %c0_i32_0 = arith.constant 0 : i32
    %c0_i32_1 = arith.constant 0 : i32
    return %c0_i32, %c0_i32_0 : i32, i32
  }
  func.func @transform_7(%arg0: i32) -> (i32, i32) {
    %c0_i32 = arith.constant 0 : i32
    %c0_i32_0 = arith.constant 0 : i32
    %c0_i32_1 = arith.constant 0 : i32
    return %c0_i32, %c0_i32_0 : i32, i32
  }
  func.func @transform_8(%arg0: i32) -> (i32, i32) {
    %c0_i32 = arith.constant 0 : i32
    %c0_i32_0 = arith.constant 0 : i32
    %c0_i32_1 = arith.constant 0 : i32
    return %c0_i32, %c0_i32_0 : i32, i32
  }
  func.func @transform_9(%arg0: i32) -> (i32, i32) {
    %c0_i32 = arith.constant 0 : i32
    %c0_i32_0 = arith.constant 0 : i32
    %c0_i32_1 = arith.constant 0 : i32
    return %c0_i32, %c0_i32_0 : i32, i32
  }
  func.func @transform_10(%arg0: i32) -> (i32, i32) {
    %c0_i32 = arith.constant 0 : i32
    %c0_i32_0 = arith.constant 0 : i32
    %c0_i32_1 = arith.constant 0 : i32
    return %c0_i32, %c0_i32_0 : i32, i32
  }
  func.func @transform_11(%arg0: i32) -> (i32, i32) {
    %c0_i32 = arith.constant 0 : i32
    %c0_i32_0 = arith.constant 0 : i32
    %c0_i32_1 = arith.constant 0 : i32
    return %c0_i32, %c0_i32_0 : i32, i32
  }
  func.func @transform_12(%arg0: i32) -> (i32, i32) {
    %c0_i32 = arith.constant 0 : i32
    %c0_i32_0 = arith.constant 0 : i32
    %c0_i32_1 = arith.constant 0 : i32
    return %c0_i32, %c0_i32_0 : i32, i32
  }
  func.func @transform_13(%arg0: i32) -> (i32, i32) {
    %c0_i32 = arith.constant 0 : i32
    %c0_i32_0 = arith.constant 0 : i32
    %c0_i32_1 = arith.constant 0 : i32
    return %c0_i32, %c0_i32_0 : i32, i32
  }
  func.func @transform_14(%arg0: i32) -> (i32, i32) {
    %c0_i32 = arith.constant 0 : i32
    %c0_i32_0 = arith.constant 0 : i32
    %c0_i32_1 = arith.constant 0 : i32
    return %c0_i32, %c0_i32_0 : i32, i32
  }
  func.func @transform_15(%arg0: i32) -> (i32, i32) {
    %c0_i32 = arith.constant 0 : i32
    %c0_i32_0 = arith.constant 0 : i32
    %c0_i32_1 = arith.constant 0 : i32
    return %c0_i32, %c0_i32_0 : i32, i32
  }
  func.func @transform_16(%arg0: i32) -> (i32, i32) {
    %c0_i32 = arith.constant 0 : i32
    %c0_i32_0 = arith.constant 0 : i32
    %c0_i32_1 = arith.constant 0 : i32
    return %c0_i32, %c0_i32_0 : i32, i32
  }
  func.func @transform_17(%arg0: i32) -> (i32, i32) {
    %c0_i32 = arith.constant 0 : i32
    %c0_i32_0 = arith.constant 0 : i32
    %c0_i32_1 = arith.constant 0 : i32
    return %c0_i32, %c0_i32_0 : i32, i32
  }
  func.func @transform_18(%arg0: i32) -> (i32, i32, i32) {
    %c0_i32 = arith.constant 0 : i32
    %c0_i32_0 = arith.constant 0 : i32
    %c0_i32_1 = arith.constant 0 : i32
    return %arg0, %c0_i32, %c0_i32_0 : i32, i32, i32
  }
}

</mosaic_0001>

<llo_original>
// kernel: conv_transformer_encoder_layer.1
$region0: #{conv_transformer_encoder_layer.1}
  #allocation0 [shape = 'u32[]', space=smem, size = 0x4, offset = 0x4, fixed_abs, tag = 'smem constant byte address 0x4 - core index']
  #allocation1 [shape = 'u32[144,128]{1,0:T(1,128)}', space=vmem, size = 0x12000, scoped, tag = 'internal scratch']
  %s0 = inlined_call_operand.vmem [shape: f32[2,8,64], index: 0, kind: input, shape index: {}]
  %s1 = inlined_call_operand.vmem [shape: f32[2,16,128], index: 1, kind: input, shape index: {}]
  %s2 = inlined_call_operand.vmem [shape: f32[128,96], index: 2, kind: input, shape index: {}]
  %s3 = inlined_call_operand.vmem [shape: f32[16,96], index: 3, kind: input, shape index: {}]
  %s4 = inlined_call_operand.vmem [shape: f32[64,64], index: 4, kind: input, shape index: {}]
  %s5 = inlined_call_operand.vmem [shape: f32[1,64], index: 5, kind: input, shape index: {}]
  %s6 = inlined_call_operand.vmem [shape: f32[64,64], index: 6, kind: input, shape index: {}]
  %s7 = inlined_call_operand.vmem [shape: f32[8,64], index: 7, kind: input, shape index: {}]
  %s8 = inlined_call_operand.vmem [shape: f32[1,64], index: 8, kind: input, shape index: {}]
  %s9 = inlined_call_operand.vmem [shape: f32[1,64], index: 9, kind: input, shape index: {}]
  %s10 = inlined_call_operand.vmem [shape: f32[64,256], index: 10, kind: input, shape index: {}]
  %s11 = inlined_call_operand.vmem [shape: f32[1,256], index: 11, kind: input, shape index: {}]
  %s12 = inlined_call_operand.vmem [shape: f32[1,256], index: 12, kind: input, shape index: {}]
  %s13 = inlined_call_operand.vmem [shape: f32[1,256], index: 13, kind: input, shape index: {}]
  %s14 = inlined_call_operand.vmem [shape: f32[256,64], index: 14, kind: input, shape index: {}]
  %s15 = inlined_call_operand.vmem [shape: f32[1,64], index: 15, kind: input, shape index: {}]
  %s16 = inlined_call_operand.vmem [shape: f32[1,64], index: 16, kind: input, shape index: {}]
  %s17 = inlined_call_operand.vmem [shape: f32[1,64], index: 17, kind: input, shape index: {}]
  %s18 = inlined_call_operand.hbm [shape: f32[2,8,64], index: 18, kind: output, shape index: {}]
  %s19 = sld [smem:[#allocation0]]
  $region105: #{conv_transformer_encoder_layer.1} parent=0
    _
  %s21 = ssub.s32 1, %s19
  %s22 = scalar_select 0, %s21, %s19
  $region1: #{conv_transformer_encoder_layer.1} parent=0
    #allocation2 [shape = 'u8[8192]{0}', space=vmem, size = 0x2000, scoped, tag = 'output window, operand 0']
    #allocation3 [shape = 's32[2]{0}', space=sflag, size = 0x8, scoped, tag = 'scoped memory for conv_transformer_encoder_layer.1']
    %23 = vsyncpa [#allocation3], 0
    %s24 = scalar_lea.sflag [#allocation3], 1
    %25 = vsyncpa %s24, 0
    loop: start=0, step=1, limit=4
    $region2: #{conv_transformer_encoder_layer.1} parent=1 // loop_pre_header
      _
    $region3: #{conv_transformer_encoder_layer.1} parent=1 // loop_header
      %s27 = sphi 0, %s31
      %p28 = scmp.ge.s32.totalorder %s27, 4
      %s37 = sphi 0, %s39
      %s40 = sphi 0, %s37
      %s41 = sphi 0, %s40
      %s57 = sphi 0, %s41
      %s63 = sphi 0, %s65
      %s66 = sphi 0, %s63
      %s67 = sphi 0, %s66
      %s83 = sphi 0, %s67
      %s87 = sphi 0, %s87
      %s89 = sphi 0, %s87
      %s90 = sphi 0, %s89
      %s104 = sphi 0, %s90
      %s108 = sphi 0, %s108
      %s110 = sphi 0, %s108
      %s111 = sphi 0, %s110
      %s125 = sphi 0, %s111
      %s129 = sphi 0, %s129
      %s131 = sphi 0, %s129
      %s132 = sphi 0, %s131
      %s146 = sphi 0, %s132
      %s150 = sphi 0, %s150
      %s152 = sphi 0, %s150
      %s153 = sphi 0, %s152
      %s167 = sphi 0, %s153
      %s171 = sphi 0, %s171
      %s173 = sphi 0, %s171
      %s174 = sphi 0, %s173
      %s188 = sphi 0, %s174
      %s192 = sphi 0, %s192
      %s194 = sphi 0, %s192
      %s195 = sphi 0, %s194
      %s209 = sphi 0, %s195
      %s213 = sphi 0, %s213
      %s215 = sphi 0, %s213
      %s216 = sphi 0, %s215
      %s230 = sphi 0, %s216
      %s234 = sphi 0, %s234
      %s236 = sphi 0, %s234
      %s237 = sphi 0, %s236
      %s251 = sphi 0, %s237
      %s255 = sphi 0, %s255
      %s257 = sphi 0, %s255
      %s258 = sphi 0, %s257
      %s272 = sphi 0, %s258
      %s276 = sphi 0, %s276
      %s278 = sphi 0, %s276
      %s279 = sphi 0, %s278
      %s293 = sphi 0, %s279
      %s297 = sphi 0, %s297
      %s299 = sphi 0, %s297
      %s300 = sphi 0, %s299
      %s314 = sphi 0, %s300
      %s318 = sphi 0, %s318
      %s320 = sphi 0, %s318
      %s321 = sphi 0, %s320
      %s335 = sphi 0, %s321
      %s339 = sphi 0, %s339
      %s341 = sphi 0, %s339
      %s342 = sphi 0, %s341
      %s356 = sphi 0, %s342
      %s360 = sphi 0, %s360
      %s362 = sphi 0, %s360
      %s363 = sphi 0, %s362
      %s377 = sphi 0, %s363
      %s381 = sphi 0, %s381
      %s383 = sphi 0, %s381
      %s384 = sphi 0, %s383
      %s398 = sphi 0, %s384
      %s402 = sphi 0, %s402
      %s404 = sphi 0, %s402
      %s405 = sphi 0, %s404
      %s419 = sphi 0, %s405
      %s425 = sphi 0, %s427
      %s428 = sphi 0, %s425
      %s429 = sphi 0, %s428
      %s445 = sphi 0, %s429
    $region4: #{conv_transformer_encoder_layer.1} parent=1 // loop_header_branch
      %30 = sbr.rel (%p28) target = $region8
    $region5: #{conv_transformer_encoder_layer.1} parent=1 // loop_body
      %s32 = ssub.s32 %s27, 1
      %s33 = ssub.s32 %s27, 2
      %s34 = sadd.s32 %s27, 1
      %s35 = ssub.s32 %s27, %s34
      %p36 = scmp.eq.s32.totalorder %s35, 0
      %s38 = sadd.s32 %s37, 1
      %s39 = scalar_select %p36, %s37, %s38
      %p42 = pneg %p36
      %p43 = scmp.eq.s32.totalorder %s27, 1
      %p44 = por %p42, %p43
      %p45 = scmp.ne.s32.totalorder %s37, %s40
      %p46 = scmp.eq.s32.totalorder %s27, 0
      %p47 = por %p45, %p46
      %p48 = scmp.ne.s32.totalorder %s37, %s40
      %p49 = scmp.eq.s32.totalorder %s32, 1
      %p50 = por %p48, %p49
      %p51 = scmp.ne.s32.totalorder %s40, %s41
      %p52 = scmp.eq.s32.totalorder %s32, 0
      %p53 = por %p51, %p52
      %p54 = scmp.ne.s32.totalorder %s40, %s41
      %p55 = scmp.eq.s32.totalorder %s33, 1
      %p56 = por %p54, %p55
      %p58 = scmp.ne.s32.totalorder %s41, %s57
      %p59 = scmp.eq.s32.totalorder %s33, 0
      %p60 = por %p58, %p59
      %s61 = ssub.s32 %s27, %s34
      %p62 = scmp.eq.s32.totalorder %s61, 0
      %s64 = sadd.s32 %s63, 1
      %s65 = scalar_select %p62, %s63, %s64
      %p68 = pneg %p62
      %p69 = scmp.eq.s32.totalorder %s27, 1
      %p70 = por %p68, %p69
      %p71 = scmp.ne.s32.totalorder %s63, %s66
      %p72 = scmp.eq.s32.totalorder %s27, 0
      %p73 = por %p71, %p72
      %p74 = scmp.ne.s32.totalorder %s63, %s66
      %p75 = scmp.eq.s32.totalorder %s32, 1
      %p76 = por %p74, %p75
      %p77 = scmp.ne.s32.totalorder %s66, %s67
      %p78 = scmp.eq.s32.totalorder %s32, 0
      %p79 = por %p77, %p78
      %p80 = scmp.ne.s32.totalorder %s66, %s67
      %p81 = scmp.eq.s32.totalorder %s33, 1
      %p82 = por %p80, %p81
      %p84 = scmp.ne.s32.totalorder %s67, %s83
      %p85 = scmp.eq.s32.totalorder %s33, 0
      %p86 = por %p84, %p85
      %s88 = sadd.s32 %s87, 1
      %p91 = scmp.eq.s32.totalorder %s27, 1
      %p92 = scmp.ne.s32.totalorder %s87, %s89
      %p93 = scmp.eq.s32.totalorder %s27, 0
      %p94 = por %p92, %p93
      %p95 = scmp.ne.s32.totalorder %s87, %s89
      %p96 = scmp.eq.s32.totalorder %s32, 1
      %p97 = por %p95, %p96
      %p98 = scmp.ne.s32.totalorder %s89, %s90
      %p99 = scmp.eq.s32.totalorder %s32, 0
      %p100 = por %p98, %p99
      %p101 = scmp.ne.s32.totalorder %s89, %s90
      %p102 = scmp.eq.s32.totalorder %s33, 1
      %p103 = por %p101, %p102
      %p105 = scmp.ne.s32.totalorder %s90, %s104
      %p106 = scmp.eq.s32.totalorder %s33, 0
      %p107 = por %p105, %p106
      %s109 = sadd.s32 %s108, 1
      %p112 = scmp.eq.s32.totalorder %s27, 1
      %p113 = scmp.ne.s32.totalorder %s108, %s110
      %p114 = scmp.eq.s32.totalorder %s27, 0
      %p115 = por %p113, %p114
      %p116 = scmp.ne.s32.totalorder %s108, %s110
      %p117 = scmp.eq.s32.totalorder %s32, 1
      %p118 = por %p116, %p117
      %p119 = scmp.ne.s32.totalorder %s110, %s111
      %p120 = scmp.eq.s32.totalorder %s32, 0
      %p121 = por %p119, %p120
      %p122 = scmp.ne.s32.totalorder %s110, %s111
      %p123 = scmp.eq.s32.totalorder %s33, 1
      %p124 = por %p122, %p123
      %p126 = scmp.ne.s32.totalorder %s111, %s125
      %p127 = scmp.eq.s32.totalorder %s33, 0
      %p128 = por %p126, %p127
      %s130 = sadd.s32 %s129, 1
      %p133 = scmp.eq.s32.totalorder %s27, 1
      %p134 = scmp.ne.s32.totalorder %s129, %s131
      %p135 = scmp.eq.s32.totalorder %s27, 0
      %p136 = por %p134, %p135
      %p137 = scmp.ne.s32.totalorder %s129, %s131
      %p138 = scmp.eq.s32.totalorder %s32, 1
      %p139 = por %p137, %p138
      %p140 = scmp.ne.s32.totalorder %s131, %s132
      %p141 = scmp.eq.s32.totalorder %s32, 0
      %p142 = por %p140, %p141
      %p143 = scmp.ne.s32.totalorder %s131, %s132
      %p144 = scmp.eq.s32.totalorder %s33, 1
      %p145 = por %p143, %p144
      %p147 = scmp.ne.s32.totalorder %s132, %s146
      %p148 = scmp.eq.s32.totalorder %s33, 0
      %p149 = por %p147, %p148
      %s151 = sadd.s32 %s150, 1
      %p154 = scmp.eq.s32.totalorder %s27, 1
      %p155 = scmp.ne.s32.totalorder %s150, %s152
      %p156 = scmp.eq.s32.totalorder %s27, 0
      %p157 = por %p155, %p156
      %p158 = scmp.ne.s32.totalorder %s150, %s152
      %p159 = scmp.eq.s32.totalorder %s32, 1
      %p160 = por %p158, %p159
      %p161 = scmp.ne.s32.totalorder %s152, %s153
      %p162 = scmp.eq.s32.totalorder %s32, 0
      %p163 = por %p161, %p162
      %p164 = scmp.ne.s32.totalorder %s152, %s153
      %p165 = scmp.eq.s32.totalorder %s33, 1
      %p166 = por %p164, %p165
      %p168 = scmp.ne.s32.totalorder %s153, %s167
      %p169 = scmp.eq.s32.totalorder %s33, 0
      %p170 = por %p168, %p169
      %s172 = sadd.s32 %s171, 1
      %p175 = scmp.eq.s32.totalorder %s27, 1
      %p176 = scmp.ne.s32.totalorder %s171, %s173
      %p177 = scmp.eq.s32.totalorder %s27, 0
      %p178 = por %p176, %p177
      %p179 = scmp.ne.s32.totalorder %s171, %s173
      %p180 = scmp.eq.s32.totalorder %s32, 1
      %p181 = por %p179, %p180
      %p182 = scmp.ne.s32.totalorder %s173, %s174
      %p183 = scmp.eq.s32.totalorder %s32, 0
      %p184 = por %p182, %p183
      %p185 = scmp.ne.s32.totalorder %s173, %s174
      %p186 = scmp.eq.s32.totalorder %s33, 1
      %p187 = por %p185, %p186
      %p189 = scmp.ne.s32.totalorder %s174, %s188
      %p190 = scmp.eq.s32.totalorder %s33, 0
      %p191 = por %p189, %p190
      %s193 = sadd.s32 %s192, 1
      %p196 = scmp.eq.s32.totalorder %s27, 1
      %p197 = scmp.ne.s32.totalorder %s192, %s194
      %p198 = scmp.eq.s32.totalorder %s27, 0
      %p199 = por %p197, %p198
      %p200 = scmp.ne.s32.totalorder %s192, %s194
      %p201 = scmp.eq.s32.totalorder %s32, 1
      %p202 = por %p200, %p201
      %p203 = scmp.ne.s32.totalorder %s194, %s195
      %p204 = scmp.eq.s32.totalorder %s32, 0
      %p205 = por %p203, %p204
      %p206 = scmp.ne.s32.totalorder %s194, %s195
      %p207 = scmp.eq.s32.totalorder %s33, 1
      %p208 = por %p206, %p207
      %p210 = scmp.ne.s32.totalorder %s195, %s209
      %p211 = scmp.eq.s32.totalorder %s33, 0
      %p212 = por %p210, %p211
      %s214 = sadd.s32 %s213, 1
      %p217 = scmp.eq.s32.totalorder %s27, 1
      %p218 = scmp.ne.s32.totalorder %s213, %s215
      %p219 = scmp.eq.s32.totalorder %s27, 0
      %p220 = por %p218, %p219
      %p221 = scmp.ne.s32.totalorder %s213, %s215
      %p222 = scmp.eq.s32.totalorder %s32, 1
      %p223 = por %p221, %p222
      %p224 = scmp.ne.s32.totalorder %s215, %s216
      %p225 = scmp.eq.s32.totalorder %s32, 0
      %p226 = por %p224, %p225
      %p227 = scmp.ne.s32.totalorder %s215, %s216
      %p228 = scmp.eq.s32.totalorder %s33, 1
      %p229 = por %p227, %p228
      %p231 = scmp.ne.s32.totalorder %s216, %s230
      %p232 = scmp.eq.s32.totalorder %s33, 0
      %p233 = por %p231, %p232
      %s235 = sadd.s32 %s234, 1
      %p238 = scmp.eq.s32.totalorder %s27, 1
      %p239 = scmp.ne.s32.totalorder %s234, %s236
      %p240 = scmp.eq.s32.totalorder %s27, 0
      %p241 = por %p239, %p240
      %p242 = scmp.ne.s32.totalorder %s234, %s236
      %p243 = scmp.eq.s32.totalorder %s32, 1
      %p244 = por %p242, %p243
      %p245 = scmp.ne.s32.totalorder %s236, %s237
      %p246 = scmp.eq.s32.totalorder %s32, 0
      %p247 = por %p245, %p246
      %p248 = scmp.ne.s32.totalorder %s236, %s237
      %p249 = scmp.eq.s32.totalorder %s33, 1
      %p250 = por %p248, %p249
      %p252 = scmp.ne.s32.totalorder %s237, %s251
      %p253 = scmp.eq.s32.totalorder %s33, 0
      %p254 = por %p252, %p253
      %s256 = sadd.s32 %s255, 1
      %p259 = scmp.eq.s32.totalorder %s27, 1
      %p260 = scmp.ne.s32.totalorder %s255, %s257
      %p261 = scmp.eq.s32.totalorder %s27, 0
      %p262 = por %p260, %p261
      %p263 = scmp.ne.s32.totalorder %s255, %s257
      %p264 = scmp.eq.s32.totalorder %s32, 1
      %p265 = por %p263, %p264
      %p266 = scmp.ne.s32.totalorder %s257, %s258
      %p267 = scmp.eq.s32.totalorder %s32, 0
      %p268 = por %p266, %p267
      %p269 = scmp.ne.s32.totalorder %s257, %s258
      %p270 = scmp.eq.s32.totalorder %s33, 1
      %p271 = por %p269, %p270
      %p273 = scmp.ne.s32.totalorder %s258, %s272
      %p274 = scmp.eq.s32.totalorder %s33, 0
      %p275 = por %p273, %p274
      %s277 = sadd.s32 %s276, 1
      %p280 = scmp.eq.s32.totalorder %s27, 1
      %p281 = scmp.ne.s32.totalorder %s276, %s278
      %p282 = scmp.eq.s32.totalorder %s27, 0
      %p283 = por %p281, %p282
      %p284 = scmp.ne.s32.totalorder %s276, %s278
      %p285 = scmp.eq.s32.totalorder %s32, 1
      %p286 = por %p284, %p285
      %p287 = scmp.ne.s32.totalorder %s278, %s279
      %p288 = scmp.eq.s32.totalorder %s32, 0
      %p289 = por %p287, %p288
      %p290 = scmp.ne.s32.totalorder %s278, %s279
      %p291 = scmp.eq.s32.totalorder %s33, 1
      %p292 = por %p290, %p291
      %p294 = scmp.ne.s32.totalorder %s279, %s293
      %p295 = scmp.eq.s32.totalorder %s33, 0
      %p296 = por %p294, %p295
      %s298 = sadd.s32 %s297, 1
      %p301 = scmp.eq.s32.totalorder %s27, 1
      %p302 = scmp.ne.s32.totalorder %s297, %s299
      %p303 = scmp.eq.s32.totalorder %s27, 0
      %p304 = por %p302, %p303
      %p305 = scmp.ne.s32.totalorder %s297, %s299
      %p306 = scmp.eq.s32.totalorder %s32, 1
      %p307 = por %p305, %p306
      %p308 = scmp.ne.s32.totalorder %s299, %s300
      %p309 = scmp.eq.s32.totalorder %s32, 0
      %p310 = por %p308, %p309
      %p311 = scmp.ne.s32.totalorder %s299, %s300
      %p312 = scmp.eq.s32.totalorder %s33, 1
      %p313 = por %p311, %p312
      %p315 = scmp.ne.s32.totalorder %s300, %s314
      %p316 = scmp.eq.s32.totalorder %s33, 0
      %p317 = por %p315, %p316
      %s319 = sadd.s32 %s318, 1
      %p322 = scmp.eq.s32.totalorder %s27, 1
      %p323 = scmp.ne.s32.totalorder %s318, %s320
      %p324 = scmp.eq.s32.totalorder %s27, 0
      %p325 = por %p323, %p324
      %p326 = scmp.ne.s32.totalorder %s318, %s320
      %p327 = scmp.eq.s32.totalorder %s32, 1
      %p328 = por %p326, %p327
      %p329 = scmp.ne.s32.totalorder %s320, %s321
      %p330 = scmp.eq.s32.totalorder %s32, 0
      %p331 = por %p329, %p330
      %p332 = scmp.ne.s32.totalorder %s320, %s321
      %p333 = scmp.eq.s32.totalorder %s33, 1
      %p334 = por %p332, %p333
      %p336 = scmp.ne.s32.totalorder %s321, %s335
      %p337 = scmp.eq.s32.totalorder %s33, 0
      %p338 = por %p336, %p337
      %s340 = sadd.s32 %s339, 1
      %p343 = scmp.eq.s32.totalorder %s27, 1
      %p344 = scmp.ne.s32.totalorder %s339, %s341
      %p345 = scmp.eq.s32.totalorder %s27, 0
      %p346 = por %p344, %p345
      %p347 = scmp.ne.s32.totalorder %s339, %s341
      %p348 = scmp.eq.s32.totalorder %s32, 1
      %p349 = por %p347, %p348
      %p350 = scmp.ne.s32.totalorder %s341, %s342
      %p351 = scmp.eq.s32.totalorder %s32, 0
      %p352 = por %p350, %p351
      %p353 = scmp.ne.s32.totalorder %s341, %s342
      %p354 = scmp.eq.s32.totalorder %s33, 1
      %p355 = por %p353, %p354
      %p357 = scmp.ne.s32.totalorder %s342, %s356
      %p358 = scmp.eq.s32.totalorder %s33, 0
      %p359 = por %p357, %p358
      %s361 = sadd.s32 %s360, 1
      %p364 = scmp.eq.s32.totalorder %s27, 1
      %p365 = scmp.ne.s32.totalorder %s360, %s362
      %p366 = scmp.eq.s32.totalorder %s27, 0
      %p367 = por %p365, %p366
      %p368 = scmp.ne.s32.totalorder %s360, %s362
      %p369 = scmp.eq.s32.totalorder %s32, 1
      %p370 = por %p368, %p369
      %p371 = scmp.ne.s32.totalorder %s362, %s363
      %p372 = scmp.eq.s32.totalorder %s32, 0
      %p373 = por %p371, %p372
      %p374 = scmp.ne.s32.totalorder %s362, %s363
      %p375 = scmp.eq.s32.totalorder %s33, 1
      %p376 = por %p374, %p375
      %p378 = scmp.ne.s32.totalorder %s363, %s377
      %p379 = scmp.eq.s32.totalorder %s33, 0
      %p380 = por %p378, %p379
      %s382 = sadd.s32 %s381, 1
      %p385 = scmp.eq.s32.totalorder %s27, 1
      %p386 = scmp.ne.s32.totalorder %s381, %s383
      %p387 = scmp.eq.s32.totalorder %s27, 0
      %p388 = por %p386, %p387
      %p389 = scmp.ne.s32.totalorder %s381, %s383
      %p390 = scmp.eq.s32.totalorder %s32, 1
      %p391 = por %p389, %p390
      %p392 = scmp.ne.s32.totalorder %s383, %s384
      %p393 = scmp.eq.s32.totalorder %s32, 0
      %p394 = por %p392, %p393
      %p395 = scmp.ne.s32.totalorder %s383, %s384
      %p396 = scmp.eq.s32.totalorder %s33, 1
      %p397 = por %p395, %p396
      %p399 = scmp.ne.s32.totalorder %s384, %s398
      %p400 = scmp.eq.s32.totalorder %s33, 0
      %p401 = por %p399, %p400
      %s403 = sadd.s32 %s402, 1
      %p406 = scmp.eq.s32.totalorder %s27, 1
      %p407 = scmp.ne.s32.totalorder %s402, %s404
      %p408 = scmp.eq.s32.totalorder %s27, 0
      %p409 = por %p407, %p408
      %p410 = scmp.ne.s32.totalorder %s402, %s404
      %p411 = scmp.eq.s32.totalorder %s32, 1
      %p412 = por %p410, %p411
      %p413 = scmp.ne.s32.totalorder %s404, %s405
      %p414 = scmp.eq.s32.totalorder %s32, 0
      %p415 = por %p413, %p414
      %p416 = scmp.ne.s32.totalorder %s404, %s405
      %p417 = scmp.eq.s32.totalorder %s33, 1
      %p418 = por %p416, %p417
      %p420 = scmp.ne.s32.totalorder %s405, %s419
      %p421 = scmp.eq.s32.totalorder %s33, 0
      %p422 = por %p420, %p421
      %s423 = ssub.s32 %s27, %s34
      %p424 = scmp.eq.s32.totalorder %s423, 0
      %s426 = sadd.s32 %s425, 1
      %s427 = scalar_select %p424, %s425, %s426
      %p430 = pneg %p424
      %p431 = scmp.eq.s32.totalorder %s27, 1
      %p432 = por %p430, %p431
      %p433 = scmp.ne.s32.totalorder %s425, %s428
      %p434 = scmp.eq.s32.totalorder %s27, 0
      %p435 = por %p433, %p434
      %p436 = scmp.ne.s32.totalorder %s425, %s428
      %p437 = scmp.eq.s32.totalorder %s32, 1
      %p438 = por %p436, %p437
      %p439 = scmp.ne.s32.totalorder %s428, %s429
      %p440 = scmp.eq.s32.totalorder %s32, 0
      %p441 = por %p439, %p440
      %p442 = scmp.ne.s32.totalorder %s428, %s429
      %p443 = scmp.eq.s32.totalorder %s33, 1
      %p444 = por %p442, %p443
      %p446 = scmp.ne.s32.totalorder %s429, %s445
      %p447 = scmp.eq.s32.totalorder %s33, 0
      %p448 = por %p446, %p447
      %p449 = scmp.le.s32.totalorder 1, %s27
      %p450 = scmp.lt.s32.totalorder %s27, 3
      %p451 = pnand %p449, %p450
      %p452 = pneg %p451
      // Predicated region
      $region9: #{conv_transformer_encoder_layer.1} parent=5 // pred_check
        _
      $region10: #{conv_transformer_encoder_layer.1} parent=5 // pred_check_branch
        %454 = sbr.rel (%p451) target = $region12
      $region11: #{conv_transformer_encoder_layer.1} parent=5 // pred_region
        %s455 = ssub.s32 %s27, 1
        // Predicated region
        $region13: #{conv_transformer_encoder_layer.1} parent=11 // pred_check
          %p456 = pneg %p100
        $region14: #{conv_transformer_encoder_layer.1} parent=11 // pred_check_branch
          %458 = sbr.rel (%p456) target = $region16
        $region15: #{conv_transformer_encoder_layer.1} parent=11 // pred_region
          _
        $region16: #{conv_transformer_encoder_layer.1} parent=11 // pred_fallthru
          _
        // Predicated region
        $region17: #{conv_transformer_encoder_layer.1} parent=11 // pred_check
          %p459 = pneg %p121
        $region18: #{conv_transformer_encoder_layer.1} parent=11 // pred_check_branch
          %461 = sbr.rel (%p459) target = $region20
        $region19: #{conv_transformer_encoder_layer.1} parent=11 // pred_region
          _
        $region20: #{conv_transformer_encoder_layer.1} parent=11 // pred_fallthru
          _
        // Predicated region
        $region21: #{conv_transformer_encoder_layer.1} parent=11 // pred_check
          %p462 = pneg %p142
        $region22: #{conv_transformer_encoder_layer.1} parent=11 // pred_check_branch
          %464 = sbr.rel (%p462) target = $region24
        $region23: #{conv_transformer_encoder_layer.1} parent=11 // pred_region
          _
        $region24: #{conv_transformer_encoder_layer.1} parent=11 // pred_fallthru
          _
        // Predicated region
        $region25: #{conv_transformer_encoder_layer.1} parent=11 // pred_check
          %p465 = pneg %p163
        $region26: #{conv_transformer_encoder_layer.1} parent=11 // pred_check_branch
          %467 = sbr.rel (%p465) target = $region28
        $region27: #{conv_transformer_encoder_layer.1} parent=11 // pred_region
          _
        $region28: #{conv_transformer_encoder_layer.1} parent=11 // pred_fallthru
          _
        // Predicated region
        $region29: #{conv_transformer_encoder_layer.1} parent=11 // pred_check
          %p468 = pneg %p184
        $region30: #{conv_transformer_encoder_layer.1} parent=11 // pred_check_branch
          %470 = sbr.rel (%p468) target = $region32
        $region31: #{conv_transformer_encoder_layer.1} parent=11 // pred_region
          _
        $region32: #{conv_transformer_encoder_layer.1} parent=11 // pred_fallthru
          _
        // Predicated region
        $region33: #{conv_transformer_encoder_layer.1} parent=11 // pred_check
          %p471 = pneg %p205
        $region34: #{conv_transformer_encoder_layer.1} parent=11 // pred_check_branch
          %473 = sbr.rel (%p471) target = $region36
        $region35: #{conv_transformer_encoder_layer.1} parent=11 // pred_region
          _
        $region36: #{conv_transformer_encoder_layer.1} parent=11 // pred_fallthru
          _
        // Predicated region
        $region37: #{conv_transformer_encoder_layer.1} parent=11 // pred_check
          %p474 = pneg %p226
        $region38: #{conv_transformer_encoder_layer.1} parent=11 // pred_check_branch
          %476 = sbr.rel (%p474) target = $region40
        $region39: #{conv_transformer_encoder_layer.1} parent=11 // pred_region
          _
        $region40: #{conv_transformer_encoder_layer.1} parent=11 // pred_fallthru
          _
        // Predicated region
        $region41: #{conv_transformer_encoder_layer.1} parent=11 // pred_check
          %p477 = pneg %p247
        $region42: #{conv_transformer_encoder_layer.1} parent=11 // pred_check_branch
          %479 = sbr.rel (%p477) target = $region44
        $region43: #{conv_transformer_encoder_layer.1} parent=11 // pred_region
          _
        $region44: #{conv_transformer_encoder_layer.1} parent=11 // pred_fallthru
          _
        // Predicated region
        $region45: #{conv_transformer_encoder_layer.1} parent=11 // pred_check
          %p480 = pneg %p268
        $region46: #{conv_transformer_encoder_layer.1} parent=11 // pred_check_branch
          %482 = sbr.rel (%p480) target = $region48
        $region47: #{conv_transformer_encoder_layer.1} parent=11 // pred_region
          _
        $region48: #{conv_transformer_encoder_layer.1} parent=11 // pred_fallthru
          _
        // Predicated region
        $region49: #{conv_transformer_encoder_layer.1} parent=11 // pred_check
          %p483 = pneg %p289
        $region50: #{conv_transformer_encoder_layer.1} parent=11 // pred_check_branch
          %485 = sbr.rel (%p483) target = $region52
        $region51: #{conv_transformer_encoder_layer.1} parent=11 // pred_region
          _
        $region52: #{conv_transformer_encoder_layer.1} parent=11 // pred_fallthru
          _
        // Predicated region
        $region53: #{conv_transformer_encoder_layer.1} parent=11 // pred_check
          %p486 = pneg %p310
        $region54: #{conv_transformer_encoder_layer.1} parent=11 // pred_check_branch
          %488 = sbr.rel (%p486) target = $region56
        $region55: #{conv_transformer_encoder_layer.1} parent=11 // pred_region
          _
        $region56: #{conv_transformer_encoder_layer.1} parent=11 // pred_fallthru
          _
        // Predicated region
        $region57: #{conv_transformer_encoder_layer.1} parent=11 // pred_check
          %p489 = pneg %p331
        $region58: #{conv_transformer_encoder_layer.1} parent=11 // pred_check_branch
          %491 = sbr.rel (%p489) target = $region60
        $region59: #{conv_transformer_encoder_layer.1} parent=11 // pred_region
          _
        $region60: #{conv_transformer_encoder_layer.1} parent=11 // pred_fallthru
          _
        // Predicated region
        $region61: #{conv_transformer_encoder_layer.1} parent=11 // pred_check
          %p492 = pneg %p352
        $region62: #{conv_transformer_encoder_layer.1} parent=11 // pred_check_branch
          %494 = sbr.rel (%p492) target = $region64
        $region63: #{conv_transformer_encoder_layer.1} parent=11 // pred_region
          _
        $region64: #{conv_transformer_encoder_layer.1} parent=11 // pred_fallthru
          _
        // Predicated region
        $region65: #{conv_transformer_encoder_layer.1} parent=11 // pred_check
          %p495 = pneg %p373
        $region66: #{conv_transformer_encoder_layer.1} parent=11 // pred_check_branch
          %497 = sbr.rel (%p495) target = $region68
        $region67: #{conv_transformer_encoder_layer.1} parent=11 // pred_region
          _
        $region68: #{conv_transformer_encoder_layer.1} parent=11 // pred_fallthru
          _
        // Predicated region
        $region69: #{conv_transformer_encoder_layer.1} parent=11 // pred_check
          %p498 = pneg %p394
        $region70: #{conv_transformer_encoder_layer.1} parent=11 // pred_check_branch
          %500 = sbr.rel (%p498) target = $region72
        $region71: #{conv_transformer_encoder_layer.1} parent=11 // pred_region
          _
        $region72: #{conv_transformer_encoder_layer.1} parent=11 // pred_fallthru
          _
        // Predicated region
        $region73: #{conv_transformer_encoder_layer.1} parent=11 // pred_check
          %p501 = pneg %p415
        $region74: #{conv_transformer_encoder_layer.1} parent=11 // pred_check_branch
          %503 = sbr.rel (%p501) target = $region76
        $region75: #{conv_transformer_encoder_layer.1} parent=11 // pred_region
          _
        $region76: #{conv_transformer_encoder_layer.1} parent=11 // pred_fallthru
          _
      $region12: #{conv_transformer_encoder_layer.1} parent=5 // pred_fallthru
        _
      %p504 = scmp.lt.s32.totalorder %s27, 2
      // Predicated region
      $region77: #{conv_transformer_encoder_layer.1} parent=5 // pred_check
        %p505 = pneg %p504
      $region78: #{conv_transformer_encoder_layer.1} parent=5 // pred_check_branch
        %507 = sbr.rel (%p505) target = $region80
      $region79: #{conv_transformer_encoder_layer.1} parent=5 // pred_region
        // Predicated region
        $region81: #{conv_transformer_encoder_layer.1} parent=79 // pred_check
          %p508 = pneg %p47
        $region82: #{conv_transformer_encoder_layer.1} parent=79 // pred_check_branch
          %510 = sbr.rel (%p508) target = $region84
        $region83: #{conv_transformer_encoder_layer.1} parent=79 // pred_region
          %p511 = scmp.lt.s32.totalorder %s27, 1
          %s512 = scalar_select %p511, %s27, 1
          %s513 = smul.addr %s512, 8
          %s514 = scalar_lea.vmem %s0, %s513
        $region84: #{conv_transformer_encoder_layer.1} parent=79 // pred_fallthru
          _
        // Predicated region
        $region85: #{conv_transformer_encoder_layer.1} parent=79 // pred_check
          %p515 = pneg %p73
        $region86: #{conv_transformer_encoder_layer.1} parent=79 // pred_check_branch
          %517 = sbr.rel (%p515) target = $region88
        $region87: #{conv_transformer_encoder_layer.1} parent=79 // pred_region
          %p518 = scmp.lt.s32.totalorder %s27, 1
          %s519 = scalar_select %p518, %s27, 1
          %s520 = smul.addr %s519, 2
          %s521 = smul.addr %s520, 8
          %s522 = scalar_lea.vmem %s1, %s521
        $region88: #{conv_transformer_encoder_layer.1} parent=79 // pred_fallthru
          _
      $region80: #{conv_transformer_encoder_layer.1} parent=5 // pred_fallthru
        _
      %p523 = scmp.le.s32.totalorder 1, %s27
      %p524 = scmp.lt.s32.totalorder %s27, 3
      %p525 = pnand %p523, %p524
      %p526 = pneg %p525
      // Predicated region
      $region89: #{conv_transformer_encoder_layer.1} parent=5 // pred_check
        _
      $region90: #{conv_transformer_encoder_layer.1} parent=5 // pred_check_branch
        %528 = sbr.rel (%p525) target = $region92
      $region91: #{conv_transformer_encoder_layer.1} parent=5 // pred_region
        %s529 = ssub.s32 %s27, 1
        %p530 = scmp.lt.s32.totalorder %s32, 1
        %s531 = scalar_select %p530, %s32, 1
        %s532 = smul.addr %s531, 8
        %s533 = scalar_lea.vmem %s0, %s532
        %p534 = pneg %p53
        %p535 = pneg %p50
        %p536 = scmp.lt.s32.totalorder %s32, 1
        %s537 = scalar_select %p536, %s32, 1
        %s538 = smul.addr %s537, 2
        %s539 = smul.addr %s538, 8
        %s540 = scalar_lea.vmem %s1, %s539
        %p541 = pneg %p79
        %p542 = pneg %p76
        %p543 = pneg %p100
        %p544 = pneg %p97
        %p545 = pneg %p121
        %p546 = pneg %p118
        %p547 = pneg %p142
        %p548 = pneg %p139
        %p549 = pneg %p163
        %p550 = pneg %p160
        %p551 = pneg %p184
        %p552 = pneg %p181
        %p553 = pneg %p205
        %p554 = pneg %p202
        %p555 = pneg %p226
        %p556 = pneg %p223
        %p557 = pneg %p247
        %p558 = pneg %p244
        %p559 = pneg %p268
        %p560 = pneg %p265
        %p561 = pneg %p289
        %p562 = pneg %p286
        %p563 = pneg %p310
        %p564 = pneg %p307
        %p565 = pneg %p331
        %p566 = pneg %p328
        %p567 = pneg %p352
        %p568 = pneg %p349
        %p569 = pneg %p373
        %p570 = pneg %p370
        %p571 = pneg %p394
        %p572 = pneg %p391
        %p573 = pneg %p415
        %p574 = pneg %p412
        %p575 = pneg %p441
        %p576 = pneg %p438
        %s577 = sand.u32 %s428, 1
        %s578 = scalar_lea.sflag [#allocation3], %s577
        %s579 = sand.u32 %s428, 1
        %s580 = smul.addr %s579, 8
        %s581 = scalar_lea.vmem [#allocation2], %s580
        %p582 = scmp.lt.s32.totalorder %s32, 1
        %s583 = scalar_select %p582, %s32, 1
        %s584 = smul.addr %s583, 8
        %s585 = scalar_lea.vmem %s0, %s584
        %p586 = scmp.lt.s32.totalorder %s32, 1
        %s587 = scalar_select %p586, %s32, 1
        %s588 = smul.addr %s587, 2
        %s589 = smul.addr %s588, 8
        %s590 = scalar_lea.vmem %s1, %s589
        %v591 = vld [vmem:[%s590] sm:$0xff]
        %v592 = vld [vmem:[%s590 + $0x8] sm:$0xff]
        %v593 = vld [vmem:[%s2] sm:$0xff]
        %v594 = vld [vmem:[%s2 + $0x8] sm:$0xff]
        %v595 = vld [vmem:[%s2 + $0x10] sm:$0xff]
        %v596 = vld [vmem:[%s2 + $0x18] sm:$0xff]
        %v597 = vld [vmem:[%s2 + $0x20] sm:$0xff]
        %v598 = vld [vmem:[%s2 + $0x28] sm:$0xff]
        %v599 = vld [vmem:[%s2 + $0x30] sm:$0xff]
        %v600 = vld [vmem:[%s2 + $0x38] sm:$0xff]
        %v601 = vld [vmem:[%s2 + $0x40] sm:$0xff]
        %v602 = vld [vmem:[%s2 + $0x48] sm:$0xff]
        %v603 = vld [vmem:[%s2 + $0x50] sm:$0xff]
        %v604 = vld [vmem:[%s2 + $0x58] sm:$0xff]
        %v605 = vld [vmem:[%s2 + $0x60] sm:$0xff]
        %v606 = vld [vmem:[%s2 + $0x68] sm:$0xff]
        %v607 = vld [vmem:[%s2 + $0x70] sm:$0xff]
        %v608 = vld [vmem:[%s2 + $0x78] sm:$0xff]
        %v609 = vld [vmem:[%s3] sm:$0xff]
        %v610 = vld [vmem:[%s3 + $0x8] sm:$0xff]
        %611 = vmatprep.subr.mxu0 0.0
        %612 = vmatpush1.msra.mxu0 %v608
        %613 = vmatprep.subr.mxu0 0.0
        %614 = vmatpush1.msra.mxu0 %v607
        %615 = vmatprep.subr.mxu0 0.0
        %616 = vmatpush1.msra.mxu0 %v606
        %617 = vmatprep.subr.mxu0 0.0
        %618 = vmatpush1.msra.mxu0 %v605
        %619 = vmatprep.subr.mxu0 0.0
        %620 = vmatpush1.msra.mxu0 %v604
        %621 = vmatprep.subr.mxu0 0.0
        %622 = vmatpush1.msra.mxu0 %v603
        %623 = vmatprep.subr.mxu0 0.0
        %624 = vmatpush1.msra.mxu0 %v602
        %625 = vmatprep.subr.mxu0 0.0
        %626 = vmatpush1.msra.mxu0 %v601
        %627 = vmatprep.subr.mxu0 0.0
        %628 = vmatpush1.msra.mxu0 %v600
        %629 = vmatprep.subr.mxu0 0.0
        %630 = vmatpush1.msra.mxu0 %v599
        %631 = vmatprep.subr.mxu0 0.0
        %632 = vmatpush1.msra.mxu0 %v598
        %633 = vmatprep.subr.mxu0 0.0
        %634 = vmatpush1.msra.mxu0 %v597
        %635 = vmatprep.subr.mxu0 0.0
        %636 = vmatpush1.msra.mxu0 %v596
        %637 = vmatprep.subr.mxu0 0.0
        %638 = vmatpush1.msra.mxu0 %v595
        %639 = vmatprep.subr.mxu0 0.0
        %640 = vmatpush1.msra.mxu0 %v594
        %641 = vmatprep.subr.mxu0 0.0
        %642 = vmatpush1.msra.mxu0 %v593
        %643 = vmatprep.subr.mxu0 0.0
        %644 = vmatpush2.msra.mxu0 0.0
        %645 = vmatprep.subr.mxu0 0.0
        %646 = vmatpush2.msra.mxu0 0.0
        %647 = vmatprep.subr.mxu0 0.0
        %648 = vmatpush2.msra.mxu0 0.0
        %649 = vmatprep.subr.mxu0 0.0
        %650 = vmatpush2.msra.mxu0 0.0
        %651 = vmatprep.subr.mxu0 0.0
        %652 = vmatpush2.msra.mxu0 0.0
        %653 = vmatprep.subr.mxu0 0.0
        %654 = vmatpush2.msra.mxu0 0.0
        %655 = vmatprep.subr.mxu0 0.0
        %656 = vmatpush2.msra.mxu0 0.0
        %657 = vmatprep.subr.mxu0 0.0
        %658 = vmatpush2.msra.mxu0 0.0
        %659 = vmatprep.subr.mxu0 0.0
        %660 = vmatpush2.msra.mxu0 0.0
        %661 = vmatprep.subr.mxu0 0.0
        %662 = vmatpush2.msra.mxu0 0.0
        %663 = vmatprep.subr.mxu0 0.0
        %664 = vmatpush2.msra.mxu0 0.0
        %665 = vmatprep.subr.mxu0 0.0
        %666 = vmatpush2.msra.mxu0 0.0
        %667 = vmatprep.subr.mxu0 0.0
        %668 = vmatpush2.msra.mxu0 0.0
        %669 = vmatprep.subr.mxu0 0.0
        %670 = vmatpush2.msra.mxu0 0.0
        %671 = vmatprep.subr.mxu0 0.0
        %672 = vmatpush2.msra.mxu0 0.0
        %673 = vmatprep.subr.mxu0 0.0
        %674 = vmatpush2.msra.mxu0 0.0
        %675 = vmatprep.mubr.f32.mxu0 0.0
        %676 = vmatmul.mubr.f32.gmra.mxu0 %v591
        %v677 = vpop.f32.mrf.mxu0
        %v678 = vadd.f32 %v609, %v677
        %v679 = vpop.f32.mrf.mxu0
        %680 = vmatprep.mubr.f32.mxu0 0.0
        %681 = vmatmul.mubr.f32.gmra.mxu0 %v592
        %v682 = vpop.f32.mrf.mxu0
        %v683 = vadd.f32 %v610, %v682
        %v684 = vpop.f32.mrf.mxu0
        %685 = vdwg.mxu0
        %687 = vrot.lane.b32.xlu0 %v678, 96
        %v688 = vpop.permute.xlu0 %687
        %vm689 = vcmask 261120
        %v690 = vsel %vm689, %v688, 0
        %v692 = vsel %vm689, %v678, 0
        %694 = vmatprep.subr.mxu0 0.0
        %695 = vmatpush1.xpose.msra.mxu0 0.0
        %696 = vmatprep.subr.mxu0 0.0
        %697 = vmatpush1.xpose.msra.mxu0 0.0
        %698 = vmatprep.subr.mxu0 0.0
        %699 = vmatpush1.xpose.msra.mxu0 0.0
        %700 = vmatprep.subr.mxu0 0.0
        %701 = vmatpush1.xpose.msra.mxu0 0.0
        %702 = vmatprep.subr.mxu0 0.0
        %703 = vmatpush1.xpose.msra.mxu0 0.0
        %704 = vmatprep.subr.mxu0 0.0
        %705 = vmatpush1.xpose.msra.mxu0 0.0
        %706 = vmatprep.subr.mxu0 0.0
        %707 = vmatpush1.xpose.msra.mxu0 0.0
        %708 = vmatprep.subr.mxu0 0.0
        %709 = vmatpush1.xpose.msra.mxu0 0.0
        %710 = vmatprep.subr.mxu0 0.0
        %711 = vmatpush1.xpose.msra.mxu0 0.0
        %712 = vmatprep.subr.mxu0 0.0
        %713 = vmatpush1.xpose.msra.mxu0 0.0
        %714 = vmatprep.subr.mxu0 0.0
        %715 = vmatpush1.xpose.msra.mxu0 0.0
        %716 = vmatprep.subr.mxu0 0.0
        %717 = vmatpush1.xpose.msra.mxu0 0.0
        %718 = vmatprep.subr.mxu0 0.0
        %719 = vmatpush1.xpose.msra.mxu0 0.0
        %720 = vmatprep.subr.mxu0 0.0
        %721 = vmatpush1.xpose.msra.mxu0 0.0
        %722 = vmatprep.subr.mxu0 0.0
        %723 = vmatpush1.xpose.msra.mxu0 0.0
        %724 = vmatprep.subr.mxu0 0.0
        %725 = vmatpush1.xpose.msra.mxu0 %v692
        %726 = vmatprep.subr.mxu0 0.0
        %727 = vmatpush2.xpose.msra.mxu0 0.0
        %728 = vmatprep.subr.mxu0 0.0
        %729 = vmatpush2.xpose.msra.mxu0 0.0
        %730 = vmatprep.subr.mxu0 0.0
        %731 = vmatpush2.xpose.msra.mxu0 0.0
        %732 = vmatprep.subr.mxu0 0.0
        %733 = vmatpush2.xpose.msra.mxu0 0.0
        %734 = vmatprep.subr.mxu0 0.0
        %735 = vmatpush2.xpose.msra.mxu0 0.0
        %736 = vmatprep.subr.mxu0 0.0
        %737 = vmatpush2.xpose.msra.mxu0 0.0
        %738 = vmatprep.subr.mxu0 0.0
        %739 = vmatpush2.xpose.msra.mxu0 0.0
        %740 = vmatprep.subr.mxu0 0.0
        %741 = vmatpush2.xpose.msra.mxu0 0.0
        %742 = vmatprep.subr.mxu0 0.0
        %743 = vmatpush2.xpose.msra.mxu0 0.0
        %744 = vmatprep.subr.mxu0 0.0
        %745 = vmatpush2.xpose.msra.mxu0 0.0
        %746 = vmatprep.subr.mxu0 0.0
        %747 = vmatpush2.xpose.msra.mxu0 0.0
        %748 = vmatprep.subr.mxu0 0.0
        %749 = vmatpush2.xpose.msra.mxu0 0.0
        %750 = vmatprep.subr.mxu0 0.0
        %751 = vmatpush2.xpose.msra.mxu0 0.0
        %752 = vmatprep.subr.mxu0 0.0
        %753 = vmatpush2.xpose.msra.mxu0 0.0
        %754 = vmatprep.subr.mxu0 0.0
        %755 = vmatpush2.xpose.msra.mxu0 0.0
        %756 = vmatprep.subr.mxu0 0.0
        %757 = vmatpush2.xpose.msra.mxu0 0.0
        %758 = vmatprep.mubr.f32.mxu0 0.0
        %759 = vmatmul.mubr.f32.gmra.mxu0 %v690
        %v760 = vpop.f32.mrf.mxu0
        %v761 = vadd.f32 0.0, %v760
        %v762 = vpop.f32.mrf.mxu0
        %763 = vdwg.mxu0
        %v764 = vmul.f32 %v761, 0.17677669
        %vm765 = vcmask 64512
        %v766 = vsel %vm765, %v764, -inf
        %767 = vmax.xlane.f32.xlu0 %v766
        %v768 = vpop.xlane.xlu0 %767
        %v769 = vsub.f32 %v764, %v768
        %v770 = vmul.f32 %v769, 1.442695
        %v771 = vpow.pop %v770
        %v772 = vsel %vm765, %v771, 0.0
        %773 = vadd.xlane.f32.xlu0 %v772
        %v774 = vpop.xlane.xlu0 %773
        %v775 = vrcp.pop %v774
        %v776 = vmul.f32 %v771, %v775
        %777 = vrot.lane.b32.xlu0 %v678, 64
        %v778 = vpop.permute.xlu0 %777
        %780 = vxpose.xlu0.b32.start [1/16] %v778, 128
        %781 = vxpose.xlu0.b32.cont [2/16] 0.0, 128
        %782 = vxpose.xlu0.b32.cont [3/16] 0.0, 128
        %783 = vxpose.xlu0.b32.cont [4/16] 0.0, 128
        %784 = vxpose.xlu0.b32.cont [5/16] 0.0, 128
        %785 = vxpose.xlu0.b32.cont [6/16] 0.0, 128
        %786 = vxpose.xlu0.b32.cont [7/16] 0.0, 128
        %787 = vxpose.xlu0.b32.cont [8/16] 0.0, 128
        %788 = vxpose.xlu0.b32.cont [9/16] 0.0, 128
        %789 = vxpose.xlu0.b32.cont [10/16] 0.0, 128
        %790 = vxpose.xlu0.b32.cont [11/16] 0.0, 128
        %791 = vxpose.xlu0.b32.cont [12/16] 0.0, 128
        %792 = vxpose.xlu0.b32.cont [13/16] 0.0, 128
        %793 = vxpose.xlu0.b32.cont [14/16] 0.0, 128
        %794 = vxpose.xlu0.b32.cont [15/16] 0.0, 128
        %795 = vxpose.xlu0.b32.end [16/16] 0.0, 128
        %v796 = vpop.trf.xlu0
        %v797 = vpop.trf.xlu0
        %v798 = vpop.trf.xlu0
        %v799 = vpop.trf.xlu0
        %v800 = vpop.trf.xlu0
        %v801 = vpop.trf.xlu0
        %v802 = vpop.trf.xlu0
        %v803 = vpop.trf.xlu0
        %v804 = vpop.trf.xlu0
        %v805 = vpop.trf.xlu0
        %v806 = vpop.trf.xlu0
        %v807 = vpop.trf.xlu0
        %v808 = vpop.trf.xlu0
        %v809 = vpop.trf.xlu0
        %v810 = vpop.trf.xlu0
        %v811 = vpop.trf.xlu0
        %v813 = vsel %vm765, %v796, 0
        %v816 = vsel %vm765, %v797, 0
        %v819 = vsel %vm765, %v798, 0
        %v822 = vsel %vm765, %v799, 0
        %824 = vmatprep.subr.mxu0 0.0
        %825 = vmatpush1.msra.mxu0 0.0
        %826 = vmatprep.subr.mxu0 0.0
        %827 = vmatpush1.msra.mxu0 0.0
        %828 = vmatprep.subr.mxu0 0.0
        %829 = vmatpush1.msra.mxu0 0.0
        %830 = vmatprep.subr.mxu0 0.0
        %831 = vmatpush1.msra.mxu0 0.0
        %832 = vmatprep.subr.mxu0 0.0
        %833 = vmatpush1.msra.mxu0 0.0
        %834 = vmatprep.subr.mxu0 0.0
        %835 = vmatpush1.msra.mxu0 0.0
        %836 = vmatprep.subr.mxu0 0.0
        %837 = vmatpush1.msra.mxu0 0.0
        %838 = vmatprep.subr.mxu0 0.0
        %839 = vmatpush1.msra.mxu0 0.0
        %840 = vmatprep.subr.mxu0 0.0
        %841 = vmatpush1.msra.mxu0 0.0
        %842 = vmatprep.subr.mxu0 0.0
        %843 = vmatpush1.msra.mxu0 0.0
        %844 = vmatprep.subr.mxu0 0.0
        %845 = vmatpush1.msra.mxu0 0.0
        %846 = vmatprep.subr.mxu0 0.0
        %847 = vmatpush1.msra.mxu0 0.0
        %848 = vmatprep.subr.mxu0 0.0
        %849 = vmatpush1.msra.mxu0 0.0
        %850 = vmatprep.subr.mxu0 0.0
        %851 = vmatpush1.msra.mxu0 0.0
        %852 = vmatprep.subr.mxu0 0.0
        %853 = vmatpush1.msra.mxu0 0.0
        %854 = vmatprep.subr.mxu0 0.0
        %855 = vmatpush1.msra.mxu0 %v776
        %856 = vmatprep.subr.mxu0 0.0
        %857 = vmatpush2.msra.mxu0 0.0
        %858 = vmatprep.subr.mxu0 0.0
        %859 = vmatpush2.msra.mxu0 0.0
        %860 = vmatprep.subr.mxu0 0.0
        %861 = vmatpush2.msra.mxu0 0.0
        %862 = vmatprep.subr.mxu0 0.0
        %863 = vmatpush2.msra.mxu0 0.0
        %864 = vmatprep.subr.mxu0 0.0
        %865 = vmatpush2.msra.mxu0 0.0
        %866 = vmatprep.subr.mxu0 0.0
        %867 = vmatpush2.msra.mxu0 0.0
        %868 = vmatprep.subr.mxu0 0.0
        %869 = vmatpush2.msra.mxu0 0.0
        %870 = vmatprep.subr.mxu0 0.0
        %871 = vmatpush2.msra.mxu0 0.0
        %872 = vmatprep.subr.mxu0 0.0
        %873 = vmatpush2.msra.mxu0 0.0
        %874 = vmatprep.subr.mxu0 0.0
        %875 = vmatpush2.msra.mxu0 0.0
        %876 = vmatprep.subr.mxu0 0.0
        %877 = vmatpush2.msra.mxu0 0.0
        %878 = vmatprep.subr.mxu0 0.0
        %879 = vmatpush2.msra.mxu0 0.0
        %880 = vmatprep.subr.mxu0 0.0
        %881 = vmatpush2.msra.mxu0 0.0
        %882 = vmatprep.subr.mxu0 0.0
        %883 = vmatpush2.msra.mxu0 0.0
        %884 = vmatprep.subr.mxu0 0.0
        %885 = vmatpush2.msra.mxu0 0.0
        %886 = vmatprep.subr.mxu0 0.0
        %887 = vmatpush2.msra.mxu0 0.0
        %888 = vmatprep.mubr.f32.mxu0 0.0
        %889 = vmatmul.mubr.f32.gmra.mxu0 %v813
        %v890 = vpop.f32.mrf.mxu0
        %v891 = vadd.f32 0.0, %v890
        %v892 = vpop.f32.mrf.mxu0
        %893 = vmatprep.mubr.f32.mxu0 0.0
        %894 = vmatmul.mubr.f32.gmra.mxu0 %v816
        %v895 = vpop.f32.mrf.mxu0
        %v896 = vadd.f32 0.0, %v895
        %v897 = vpop.f32.mrf.mxu0
        %898 = vmatprep.mubr.f32.mxu0 0.0
        %899 = vmatmul.mubr.f32.gmra.mxu0 %v819
        %v900 = vpop.f32.mrf.mxu0
        %v901 = vadd.f32 0.0, %v900
        %v902 = vpop.f32.mrf.mxu0
        %903 = vmatprep.mubr.f32.mxu0 0.0
        %904 = vmatmul.mubr.f32.gmra.mxu0 %v822
        %v905 = vpop.f32.mrf.mxu0
        %v906 = vadd.f32 0.0, %v905
        %v907 = vpop.f32.mrf.mxu0
        %908 = vdwg.mxu0
        %910 = vrot.lane.b32.xlu0 %v683, 96
        %v911 = vpop.permute.xlu0 %910
        %v912 = vsel %vm689, %v911, 0
        %v914 = vsel %vm689, %v683, 0
        %916 = vmatprep.subr.mxu0 0.0
        %917 = vmatpush1.xpose.msra.mxu0 0.0
        %918 = vmatprep.subr.mxu0 0.0
        %919 = vmatpush1.xpose.msra.mxu0 0.0
        %920 = vmatprep.subr.mxu0 0.0
        %921 = vmatpush1.xpose.msra.mxu0 0.0
        %922 = vmatprep.subr.mxu0 0.0
        %923 = vmatpush1.xpose.msra.mxu0 0.0
        %924 = vmatprep.subr.mxu0 0.0
        %925 = vmatpush1.xpose.msra.mxu0 0.0
        %926 = vmatprep.subr.mxu0 0.0
        %927 = vmatpush1.xpose.msra.mxu0 0.0
        %928 = vmatprep.subr.mxu0 0.0
        %929 = vmatpush1.xpose.msra.mxu0 0.0
        %930 = vmatprep.subr.mxu0 0.0
        %931 = vmatpush1.xpose.msra.mxu0 0.0
        %932 = vmatprep.subr.mxu0 0.0
        %933 = vmatpush1.xpose.msra.mxu0 0.0
        %934 = vmatprep.subr.mxu0 0.0
        %935 = vmatpush1.xpose.msra.mxu0 0.0
        %936 = vmatprep.subr.mxu0 0.0
        %937 = vmatpush1.xpose.msra.mxu0 0.0
        %938 = vmatprep.subr.mxu0 0.0
        %939 = vmatpush1.xpose.msra.mxu0 0.0
        %940 = vmatprep.subr.mxu0 0.0
        %941 = vmatpush1.xpose.msra.mxu0 0.0
        %942 = vmatprep.subr.mxu0 0.0
        %943 = vmatpush1.xpose.msra.mxu0 0.0
        %944 = vmatprep.subr.mxu0 0.0
        %945 = vmatpush1.xpose.msra.mxu0 0.0
        %946 = vmatprep.subr.mxu0 0.0
        %947 = vmatpush1.xpose.msra.mxu0 %v914
        %948 = vmatprep.subr.mxu0 0.0
        %949 = vmatpush2.xpose.msra.mxu0 0.0
        %950 = vmatprep.subr.mxu0 0.0
        %951 = vmatpush2.xpose.msra.mxu0 0.0
        %952 = vmatprep.subr.mxu0 0.0
        %953 = vmatpush2.xpose.msra.mxu0 0.0
        %954 = vmatprep.subr.mxu0 0.0
        %955 = vmatpush2.xpose.msra.mxu0 0.0
        %956 = vmatprep.subr.mxu0 0.0
        %957 = vmatpush2.xpose.msra.mxu0 0.0
        %958 = vmatprep.subr.mxu0 0.0
        %959 = vmatpush2.xpose.msra.mxu0 0.0
        %960 = vmatprep.subr.mxu0 0.0
        %961 = vmatpush2.xpose.msra.mxu0 0.0
        %962 = vmatprep.subr.mxu0 0.0
        %963 = vmatpush2.xpose.msra.mxu0 0.0
        %964 = vmatprep.subr.mxu0 0.0
        %965 = vmatpush2.xpose.msra.mxu0 0.0
        %966 = vmatprep.subr.mxu0 0.0
        %967 = vmatpush2.xpose.msra.mxu0 0.0
        %968 = vmatprep.subr.mxu0 0.0
        %969 = vmatpush2.xpose.msra.mxu0 0.0
        %970 = vmatprep.subr.mxu0 0.0
        %971 = vmatpush2.xpose.msra.mxu0 0.0
        %972 = vmatprep.subr.mxu0 0.0
        %973 = vmatpush2.xpose.msra.mxu0 0.0
        %974 = vmatprep.subr.mxu0 0.0
        %975 = vmatpush2.xpose.msra.mxu0 0.0
        %976 = vmatprep.subr.mxu0 0.0
        %977 = vmatpush2.xpose.msra.mxu0 0.0
        %978 = vmatprep.subr.mxu0 0.0
        %979 = vmatpush2.xpose.msra.mxu0 0.0
        %980 = vmatprep.mubr.f32.mxu0 0.0
        %981 = vmatmul.mubr.f32.gmra.mxu0 %v912
        %v982 = vpop.f32.mrf.mxu0
        %v983 = vadd.f32 0.0, %v982
        %v984 = vpop.f32.mrf.mxu0
        %985 = vdwg.mxu0
        %v986 = vmul.f32 %v983, 0.17677669
        %v987 = vsel %vm765, %v986, -inf
        %988 = vmax.xlane.f32.xlu0 %v987
        %v989 = vpop.xlane.xlu0 %988
        %v990 = vsub.f32 %v986, %v989
        %v991 = vmul.f32 %v990, 1.442695
        %v992 = vpow.pop %v991
        %v993 = vsel %vm765, %v992, 0.0
        %994 = vadd.xlane.f32.xlu0 %v993
        %v995 = vpop.xlane.xlu0 %994
        %v996 = vrcp.pop %v995
        %v997 = vmul.f32 %v992, %v996
        %998 = vrot.lane.b32.xlu0 %v683, 64
        %v999 = vpop.permute.xlu0 %998
        %1001 = vxpose.xlu0.b32.start [1/16] %v999, 128
        %1002 = vxpose.xlu0.b32.cont [2/16] 0.0, 128
        %1003 = vxpose.xlu0.b32.cont [3/16] 0.0, 128
        %1004 = vxpose.xlu0.b32.cont [4/16] 0.0, 128
        %1005 = vxpose.xlu0.b32.cont [5/16] 0.0, 128
        %1006 = vxpose.xlu0.b32.cont [6/16] 0.0, 128
        %1007 = vxpose.xlu0.b32.cont [7/16] 0.0, 128
        %1008 = vxpose.xlu0.b32.cont [8/16] 0.0, 128
        %1009 = vxpose.xlu0.b32.cont [9/16] 0.0, 128
        %1010 = vxpose.xlu0.b32.cont [10/16] 0.0, 128
        %1011 = vxpose.xlu0.b32.cont [11/16] 0.0, 128
        %1012 = vxpose.xlu0.b32.cont [12/16] 0.0, 128
        %1013 = vxpose.xlu0.b32.cont [13/16] 0.0, 128
        %1014 = vxpose.xlu0.b32.cont [14/16] 0.0, 128
        %1015 = vxpose.xlu0.b32.cont [15/16] 0.0, 128
        %1016 = vxpose.xlu0.b32.end [16/16] 0.0, 128
        %v1017 = vpop.trf.xlu0
        %v1018 = vpop.trf.xlu0
        %v1019 = vpop.trf.xlu0
        %v1020 = vpop.trf.xlu0
        %v1021 = vpop.trf.xlu0
        %v1022 = vpop.trf.xlu0
        %v1023 = vpop.trf.xlu0
        %v1024 = vpop.trf.xlu0
        %v1025 = vpop.trf.xlu0
        %v1026 = vpop.trf.xlu0
        %v1027 = vpop.trf.xlu0
        %v1028 = vpop.trf.xlu0
        %v1029 = vpop.trf.xlu0
        %v1030 = vpop.trf.xlu0
        %v1031 = vpop.trf.xlu0
        %v1032 = vpop.trf.xlu0
        %v1034 = vsel %vm765, %v1017, 0
        %v1037 = vsel %vm765, %v1018, 0
        %v1040 = vsel %vm765, %v1019, 0
        %v1043 = vsel %vm765, %v1020, 0
        %1045 = vmatprep.subr.mxu0 0.0
        %1046 = vmatpush1.msra.mxu0 0.0
        %1047 = vmatprep.subr.mxu0 0.0
        %1048 = vmatpush1.msra.mxu0 0.0
        %1049 = vmatprep.subr.mxu0 0.0
        %1050 = vmatpush1.msra.mxu0 0.0
        %1051 = vmatprep.subr.mxu0 0.0
        %1052 = vmatpush1.msra.mxu0 0.0
        %1053 = vmatprep.subr.mxu0 0.0
        %1054 = vmatpush1.msra.mxu0 0.0
        %1055 = vmatprep.subr.mxu0 0.0
        %1056 = vmatpush1.msra.mxu0 0.0
        %1057 = vmatprep.subr.mxu0 0.0
        %1058 = vmatpush1.msra.mxu0 0.0
        %1059 = vmatprep.subr.mxu0 0.0
        %1060 = vmatpush1.msra.mxu0 0.0
        %1061 = vmatprep.subr.mxu0 0.0
        %1062 = vmatpush1.msra.mxu0 0.0
        %1063 = vmatprep.subr.mxu0 0.0
        %1064 = vmatpush1.msra.mxu0 0.0
        %1065 = vmatprep.subr.mxu0 0.0
        %1066 = vmatpush1.msra.mxu0 0.0
        %1067 = vmatprep.subr.mxu0 0.0
        %1068 = vmatpush1.msra.mxu0 0.0
        %1069 = vmatprep.subr.mxu0 0.0
        %1070 = vmatpush1.msra.mxu0 0.0
        %1071 = vmatprep.subr.mxu0 0.0
        %1072 = vmatpush1.msra.mxu0 0.0
        %1073 = vmatprep.subr.mxu0 0.0
        %1074 = vmatpush1.msra.mxu0 0.0
        %1075 = vmatprep.subr.mxu0 0.0
        %1076 = vmatpush1.msra.mxu0 %v997
        %1077 = vmatprep.subr.mxu0 0.0
        %1078 = vmatpush2.msra.mxu0 0.0
        %1079 = vmatprep.subr.mxu0 0.0
        %1080 = vmatpush2.msra.mxu0 0.0
        %1081 = vmatprep.subr.mxu0 0.0
        %1082 = vmatpush2.msra.mxu0 0.0
        %1083 = vmatprep.subr.mxu0 0.0
        %1084 = vmatpush2.msra.mxu0 0.0
        %1085 = vmatprep.subr.mxu0 0.0
        %1086 = vmatpush2.msra.mxu0 0.0
        %1087 = vmatprep.subr.mxu0 0.0
        %1088 = vmatpush2.msra.mxu0 0.0
        %1089 = vmatprep.subr.mxu0 0.0
        %1090 = vmatpush2.msra.mxu0 0.0
        %1091 = vmatprep.subr.mxu0 0.0
        %1092 = vmatpush2.msra.mxu0 0.0
        %1093 = vmatprep.subr.mxu0 0.0
        %1094 = vmatpush2.msra.mxu0 0.0
        %1095 = vmatprep.subr.mxu0 0.0
        %1096 = vmatpush2.msra.mxu0 0.0
        %1097 = vmatprep.subr.mxu0 0.0
        %1098 = vmatpush2.msra.mxu0 0.0
        %1099 = vmatprep.subr.mxu0 0.0
        %1100 = vmatpush2.msra.mxu0 0.0
        %1101 = vmatprep.subr.mxu0 0.0
        %1102 = vmatpush2.msra.mxu0 0.0
        %1103 = vmatprep.subr.mxu0 0.0
        %1104 = vmatpush2.msra.mxu0 0.0
        %1105 = vmatprep.subr.mxu0 0.0
        %1106 = vmatpush2.msra.mxu0 0.0
        %1107 = vmatprep.subr.mxu0 0.0
        %1108 = vmatpush2.msra.mxu0 0.0
        %1109 = vmatprep.mubr.f32.mxu0 0.0
        %1110 = vmatmul.mubr.f32.gmra.mxu0 %v1034
        %v1111 = vpop.f32.mrf.mxu0
        %v1112 = vadd.f32 0.0, %v1111
        %v1113 = vpop.f32.mrf.mxu0
        %1114 = vmatprep.mubr.f32.mxu0 0.0
        %1115 = vmatmul.mubr.f32.gmra.mxu0 %v1037
        %v1116 = vpop.f32.mrf.mxu0
        %v1117 = vadd.f32 0.0, %v1116
        %v1118 = vpop.f32.mrf.mxu0
        %1119 = vmatprep.mubr.f32.mxu0 0.0
        %1120 = vmatmul.mubr.f32.gmra.mxu0 %v1040
        %v1121 = vpop.f32.mrf.mxu0
        %v1122 = vadd.f32 0.0, %v1121
        %v1123 = vpop.f32.mrf.mxu0
        %1124 = vmatprep.mubr.f32.mxu0 0.0
        %1125 = vmatmul.mubr.f32.gmra.mxu0 %v1043
        %v1126 = vpop.f32.mrf.mxu0
        %v1127 = vadd.f32 0.0, %v1126
        %v1128 = vpop.f32.mrf.mxu0
        %1129 = vdwg.mxu0
        %1138 = vrot.lane.b32.xlu0 %v891, 8
        %v1139 = vpop.permute.xlu0 %1138
        %1140 = vrot.lane.b32.xlu0 %v896, 8
        %v1141 = vpop.permute.xlu0 %1140
        %1142 = vrot.lane.b32.xlu0 %v901, 8
        %v1143 = vpop.permute.xlu0 %1142
        %1144 = vrot.lane.b32.xlu0 %v906, 8
        %v1145 = vpop.permute.xlu0 %1144
        %1146 = vrot.lane.b32.xlu0 %v1112, 8
        %v1147 = vpop.permute.xlu0 %1146
        %1148 = vrot.lane.b32.xlu0 %v1117, 8
        %v1149 = vpop.permute.xlu0 %1148
        %1150 = vrot.lane.b32.xlu0 %v1122, 8
        %v1151 = vpop.permute.xlu0 %1150
        %1152 = vrot.lane.b32.xlu0 %v1127, 8
        %v1153 = vpop.permute.xlu0 %1152
        %1162 = vrot.lane.b32.xlu0 %v891, 16
        %v1163 = vpop.permute.xlu0 %1162
        %1164 = vrot.lane.b32.xlu0 %v896, 16
        %v1165 = vpop.permute.xlu0 %1164
        %1166 = vrot.lane.b32.xlu0 %v901, 16
        %v1167 = vpop.permute.xlu0 %1166
        %1168 = vrot.lane.b32.xlu0 %v906, 16
        %v1169 = vpop.permute.xlu0 %1168
        %1170 = vrot.lane.b32.xlu0 %v1112, 16
        %v1171 = vpop.permute.xlu0 %1170
        %1172 = vrot.lane.b32.xlu0 %v1117, 16
        %v1173 = vpop.permute.xlu0 %1172
        %1174 = vrot.lane.b32.xlu0 %v1122, 16
        %v1175 = vpop.permute.xlu0 %1174
        %1176 = vrot.lane.b32.xlu0 %v1127, 16
        %v1177 = vpop.permute.xlu0 %1176
        %1186 = vrot.lane.b32.xlu0 %v891, 24
        %v1187 = vpop.permute.xlu0 %1186
        %1188 = vrot.lane.b32.xlu0 %v896, 24
        %v1189 = vpop.permute.xlu0 %1188
        %1190 = vrot.lane.b32.xlu0 %v901, 24
        %v1191 = vpop.permute.xlu0 %1190
        %1192 = vrot.lane.b32.xlu0 %v906, 24
        %v1193 = vpop.permute.xlu0 %1192
        %1194 = vrot.lane.b32.xlu0 %v1112, 24
        %v1195 = vpop.permute.xlu0 %1194
        %1196 = vrot.lane.b32.xlu0 %v1117, 24
        %v1197 = vpop.permute.xlu0 %1196
        %1198 = vrot.lane.b32.xlu0 %v1122, 24
        %v1199 = vpop.permute.xlu0 %1198
        %1200 = vrot.lane.b32.xlu0 %v1127, 24
        %v1201 = vpop.permute.xlu0 %1200
        %1210 = vrot.lane.b32.xlu0 %v891, 32
        %v1211 = vpop.permute.xlu0 %1210
        %1212 = vrot.lane.b32.xlu0 %v896, 32
        %v1213 = vpop.permute.xlu0 %1212
        %1214 = vrot.lane.b32.xlu0 %v901, 32
        %v1215 = vpop.permute.xlu0 %1214
        %1216 = vrot.lane.b32.xlu0 %v906, 32
        %v1217 = vpop.permute.xlu0 %1216
        %1218 = vrot.lane.b32.xlu0 %v1112, 32
        %v1219 = vpop.permute.xlu0 %1218
        %1220 = vrot.lane.b32.xlu0 %v1117, 32
        %v1221 = vpop.permute.xlu0 %1220
        %1222 = vrot.lane.b32.xlu0 %v1122, 32
        %v1223 = vpop.permute.xlu0 %1222
        %1224 = vrot.lane.b32.xlu0 %v1127, 32
        %v1225 = vpop.permute.xlu0 %1224
        %1234 = vrot.lane.b32.xlu0 %v891, 40
        %v1235 = vpop.permute.xlu0 %1234
        %1236 = vrot.lane.b32.xlu0 %v896, 40
        %v1237 = vpop.permute.xlu0 %1236
        %1238 = vrot.lane.b32.xlu0 %v901, 40
        %v1239 = vpop.permute.xlu0 %1238
        %1240 = vrot.lane.b32.xlu0 %v906, 40
        %v1241 = vpop.permute.xlu0 %1240
        %1242 = vrot.lane.b32.xlu0 %v1112, 40
        %v1243 = vpop.permute.xlu0 %1242
        %1244 = vrot.lane.b32.xlu0 %v1117, 40
        %v1245 = vpop.permute.xlu0 %1244
        %1246 = vrot.lane.b32.xlu0 %v1122, 40
        %v1247 = vpop.permute.xlu0 %1246
        %1248 = vrot.lane.b32.xlu0 %v1127, 40
        %v1249 = vpop.permute.xlu0 %1248
        %1258 = vrot.lane.b32.xlu0 %v891, 48
        %v1259 = vpop.permute.xlu0 %1258
        %1260 = vrot.lane.b32.xlu0 %v896, 48
        %v1261 = vpop.permute.xlu0 %1260
        %1262 = vrot.lane.b32.xlu0 %v901, 48
        %v1263 = vpop.permute.xlu0 %1262
        %1264 = vrot.lane.b32.xlu0 %v906, 48
        %v1265 = vpop.permute.xlu0 %1264
        %1266 = vrot.lane.b32.xlu0 %v1112, 48
        %v1267 = vpop.permute.xlu0 %1266
        %1268 = vrot.lane.b32.xlu0 %v1117, 48
        %v1269 = vpop.permute.xlu0 %1268
        %1270 = vrot.lane.b32.xlu0 %v1122, 48
        %v1271 = vpop.permute.xlu0 %1270
        %1272 = vrot.lane.b32.xlu0 %v1127, 48
        %v1273 = vpop.permute.xlu0 %1272
        %1282 = vrot.lane.b32.xlu0 %v891, 56
        %v1283 = vpop.permute.xlu0 %1282
        %1284 = vrot.lane.b32.xlu0 %v896, 56
        %v1285 = vpop.permute.xlu0 %1284
        %1286 = vrot.lane.b32.xlu0 %v901, 56
        %v1287 = vpop.permute.xlu0 %1286
        %1288 = vrot.lane.b32.xlu0 %v906, 56
        %v1289 = vpop.permute.xlu0 %1288
        %1290 = vrot.lane.b32.xlu0 %v1112, 56
        %v1291 = vpop.permute.xlu0 %1290
        %1292 = vrot.lane.b32.xlu0 %v1117, 56
        %v1293 = vpop.permute.xlu0 %1292
        %1294 = vrot.lane.b32.xlu0 %v1122, 56
        %v1295 = vpop.permute.xlu0 %1294
        %1296 = vrot.lane.b32.xlu0 %v1127, 56
        %v1297 = vpop.permute.xlu0 %1296
        %v1306 = vsel %vm765, %v891, %v1139
        %v1307 = vsel %vm765, %v896, %v1141
        %v1308 = vsel %vm765, %v901, %v1143
        %v1309 = vsel %vm765, %v906, %v1145
        %v1310 = vsel %vm765, %v1112, %v1147
        %v1311 = vsel %vm765, %v1117, %v1149
        %v1312 = vsel %vm765, %v1122, %v1151
        %v1313 = vsel %vm765, %v1127, %v1153
        %vm1314 = vcmask 130048
        %v1315 = vsel %vm1314, %v1306, %v1163
        %v1316 = vsel %vm1314, %v1307, %v1165
        %v1317 = vsel %vm1314, %v1308, %v1167
        %v1318 = vsel %vm1314, %v1309, %v1169
        %v1319 = vsel %vm1314, %v1310, %v1171
        %v1320 = vsel %vm1314, %v1311, %v1173
        %v1321 = vsel %vm1314, %v1312, %v1175
        %v1322 = vsel %vm1314, %v1313, %v1177
        %vm1323 = vcmask 195584
        %v1324 = vsel %vm1323, %v1315, %v1187
        %v1325 = vsel %vm1323, %v1316, %v1189
        %v1326 = vsel %vm1323, %v1317, %v1191
        %v1327 = vsel %vm1323, %v1318, %v1193
        %v1328 = vsel %vm1323, %v1319, %v1195
        %v1329 = vsel %vm1323, %v1320, %v1197
        %v1330 = vsel %vm1323, %v1321, %v1199
        %v1331 = vsel %vm1323, %v1322, %v1201
        %v1332 = vsel %vm689, %v1324, %v1211
        %v1333 = vsel %vm689, %v1325, %v1213
        %v1334 = vsel %vm689, %v1326, %v1215
        %v1335 = vsel %vm689, %v1327, %v1217
        %v1336 = vsel %vm689, %v1328, %v1219
        %v1337 = vsel %vm689, %v1329, %v1221
        %v1338 = vsel %vm689, %v1330, %v1223
        %v1339 = vsel %vm689, %v1331, %v1225
        %vm1340 = vcmask 326656
        %v1341 = vsel %vm1340, %v1332, %v1235
        %v1342 = vsel %vm1340, %v1333, %v1237
        %v1343 = vsel %vm1340, %v1334, %v1239
        %v1344 = vsel %vm1340, %v1335, %v1241
        %v1345 = vsel %vm1340, %v1336, %v1243
        %v1346 = vsel %vm1340, %v1337, %v1245
        %v1347 = vsel %vm1340, %v1338, %v1247
        %v1348 = vsel %vm1340, %v1339, %v1249
        %vm1349 = vcmask 392192
        %v1350 = vsel %vm1349, %v1341, %v1259
        %v1351 = vsel %vm1349, %v1342, %v1261
        %v1352 = vsel %vm1349, %v1343, %v1263
        %v1353 = vsel %vm1349, %v1344, %v1265
        %v1354 = vsel %vm1349, %v1345, %v1267
        %v1355 = vsel %vm1349, %v1346, %v1269
        %v1356 = vsel %vm1349, %v1347, %v1271
        %v1357 = vsel %vm1349, %v1348, %v1273
        %vm1358 = vcmask 457728
        %v1359 = vsel %vm1358, %v1350, %v1283
        %v1360 = vsel %vm1358, %v1351, %v1285
        %v1361 = vsel %vm1358, %v1352, %v1287
        %v1362 = vsel %vm1358, %v1353, %v1289
        %v1363 = vsel %vm1358, %v1354, %v1291
        %v1364 = vsel %vm1358, %v1355, %v1293
        %v1365 = vsel %vm1358, %v1356, %v1295
        %v1366 = vsel %vm1358, %v1357, %v1297
        %v1367 = vld [vmem:[%s7] sm:$0xff]
        %v1368 = vld [vmem:[%s6] sm:$0xff]
        %v1369 = vld [vmem:[%s6 + $0x8] sm:$0xff]
        %v1370 = vld [vmem:[%s6 + $0x10] sm:$0xff]
        %v1371 = vld [vmem:[%s6 + $0x18] sm:$0xff]
        %v1372 = vld [vmem:[%s6 + $0x20] sm:$0xff]
        %v1373 = vld [vmem:[%s6 + $0x28] sm:$0xff]
        %v1374 = vld [vmem:[%s6 + $0x30] sm:$0xff]
        %v1375 = vld [vmem:[%s6 + $0x38] sm:$0xff]
        %v1376 = vmul.f32 %v1359, %v1368
        %v1377 = vmul.f32 %v1360, %v1369
        %v1378 = vmul.f32 %v1361, %v1370
        %v1379 = vmul.f32 %v1362, %v1371
        %v1380 = vmul.f32 %v1363, %v1372
        %v1381 = vmul.f32 %v1364, %v1373
        %v1382 = vmul.f32 %v1365, %v1374
        %v1383 = vmul.f32 %v1366, %v1375
        %vm1384 = vcmask 523264
        %v1386 = vsel %vm1384, %v1367, 0
        %1388 = vmatprep.subr.mxu0 0.0
        %1389 = vmatpush1.msra.mxu0 0.0
        %1390 = vmatprep.subr.mxu0 0.0
        %1391 = vmatpush1.msra.mxu0 0.0
        %1392 = vmatprep.subr.mxu0 0.0
        %1393 = vmatpush1.msra.mxu0 0.0
        %1394 = vmatprep.subr.mxu0 0.0
        %1395 = vmatpush1.msra.mxu0 0.0
        %1396 = vmatprep.subr.mxu0 0.0
        %1397 = vmatpush1.msra.mxu0 0.0
        %1398 = vmatprep.subr.mxu0 0.0
        %1399 = vmatpush1.msra.mxu0 0.0
        %1400 = vmatprep.subr.mxu0 0.0
        %1401 = vmatpush1.msra.mxu0 0.0
        %1402 = vmatprep.subr.mxu0 0.0
        %1403 = vmatpush1.msra.mxu0 0.0
        %1404 = vmatprep.subr.mxu0 0.0
        %1405 = vmatpush1.msra.mxu0 %v1383
        %1406 = vmatprep.subr.mxu0 0.0
        %1407 = vmatpush1.msra.mxu0 %v1382
        %1408 = vmatprep.subr.mxu0 0.0
        %1409 = vmatpush1.msra.mxu0 %v1381
        %1410 = vmatprep.subr.mxu0 0.0
        %1411 = vmatpush1.msra.mxu0 %v1380
        %1412 = vmatprep.subr.mxu0 0.0
        %1413 = vmatpush1.msra.mxu0 %v1379
        %1414 = vmatprep.subr.mxu0 0.0
        %1415 = vmatpush1.msra.mxu0 %v1378
        %1416 = vmatprep.subr.mxu0 0.0
        %1417 = vmatpush1.msra.mxu0 %v1377
        %1418 = vmatprep.subr.mxu0 0.0
        %1419 = vmatpush1.msra.mxu0 %v1376
        %1420 = vmatprep.subr.mxu0 0.0
        %1421 = vmatpush2.msra.mxu0 0.0
        %1422 = vmatprep.subr.mxu0 0.0
        %1423 = vmatpush2.msra.mxu0 0.0
        %1424 = vmatprep.subr.mxu0 0.0
        %1425 = vmatpush2.msra.mxu0 0.0
        %1426 = vmatprep.subr.mxu0 0.0
        %1427 = vmatpush2.msra.mxu0 0.0
        %1428 = vmatprep.subr.mxu0 0.0
        %1429 = vmatpush2.msra.mxu0 0.0
        %1430 = vmatprep.subr.mxu0 0.0
        %1431 = vmatpush2.msra.mxu0 0.0
        %1432 = vmatprep.subr.mxu0 0.0
        %1433 = vmatpush2.msra.mxu0 0.0
        %1434 = vmatprep.subr.mxu0 0.0
        %1435 = vmatpush2.msra.mxu0 0.0
        %1436 = vmatprep.subr.mxu0 0.0
        %1437 = vmatpush2.msra.mxu0 0.0
        %1438 = vmatprep.subr.mxu0 0.0
        %1439 = vmatpush2.msra.mxu0 0.0
        %1440 = vmatprep.subr.mxu0 0.0
        %1441 = vmatpush2.msra.mxu0 0.0
        %1442 = vmatprep.subr.mxu0 0.0
        %1443 = vmatpush2.msra.mxu0 0.0
        %1444 = vmatprep.subr.mxu0 0.0
        %1445 = vmatpush2.msra.mxu0 0.0
        %1446 = vmatprep.subr.mxu0 0.0
        %1447 = vmatpush2.msra.mxu0 0.0
        %1448 = vmatprep.subr.mxu0 0.0
        %1449 = vmatpush2.msra.mxu0 0.0
        %1450 = vmatprep.subr.mxu0 0.0
        %1451 = vmatpush2.msra.mxu0 0.0
        %1452 = vmatprep.mubr.f32.mxu0 0.0
        %1453 = vmatmul.mubr.f32.gmra.mxu0 %v1386
        %v1454 = vpop.f32.mrf.mxu0
        %v1455 = vadd.f32 0.0, %v1454
        %v1456 = vpop.f32.mrf.mxu0
        %1457 = vdwg.mxu0
        %v1458 = vld [vmem:[%s4] sm:$0xff]
        %v1459 = vld [vmem:[%s4 + $0x8] sm:$0xff]
        %v1460 = vld [vmem:[%s4 + $0x10] sm:$0xff]
        %v1461 = vld [vmem:[%s4 + $0x18] sm:$0xff]
        %v1462 = vld [vmem:[%s4 + $0x20] sm:$0xff]
        %v1463 = vld [vmem:[%s4 + $0x28] sm:$0xff]
        %v1464 = vld [vmem:[%s4 + $0x30] sm:$0xff]
        %v1465 = vld [vmem:[%s4 + $0x38] sm:$0xff]
        %v1466 = vld [vmem:[%s5] sm:$0x1]
        %v1468 = vlaneseq
        %v1469 = vshrl.u32 %v1468, 7
        %v1470 = vsub.s32 0, %v1469
        %v1471 = vrot.slane %v1466, %v1470
        %v1474 = vsel %vm1384, %v1455, 0
        %1476 = vmatprep.subr.mxu0 0.0
        %1477 = vmatpush1.msra.mxu0 0.0
        %1478 = vmatprep.subr.mxu0 0.0
        %1479 = vmatpush1.msra.mxu0 0.0
        %1480 = vmatprep.subr.mxu0 0.0
        %1481 = vmatpush1.msra.mxu0 0.0
        %1482 = vmatprep.subr.mxu0 0.0
        %1483 = vmatpush1.msra.mxu0 0.0
        %1484 = vmatprep.subr.mxu0 0.0
        %1485 = vmatpush1.msra.mxu0 0.0
        %1486 = vmatprep.subr.mxu0 0.0
        %1487 = vmatpush1.msra.mxu0 0.0
        %1488 = vmatprep.subr.mxu0 0.0
        %1489 = vmatpush1.msra.mxu0 0.0
        %1490 = vmatprep.subr.mxu0 0.0
        %1491 = vmatpush1.msra.mxu0 0.0
        %1492 = vmatprep.subr.mxu0 0.0
        %1493 = vmatpush1.msra.mxu0 %v1465
        %1494 = vmatprep.subr.mxu0 0.0
        %1495 = vmatpush1.msra.mxu0 %v1464
        %1496 = vmatprep.subr.mxu0 0.0
        %1497 = vmatpush1.msra.mxu0 %v1463
        %1498 = vmatprep.subr.mxu0 0.0
        %1499 = vmatpush1.msra.mxu0 %v1462
        %1500 = vmatprep.subr.mxu0 0.0
        %1501 = vmatpush1.msra.mxu0 %v1461
        %1502 = vmatprep.subr.mxu0 0.0
        %1503 = vmatpush1.msra.mxu0 %v1460
        %1504 = vmatprep.subr.mxu0 0.0
        %1505 = vmatpush1.msra.mxu0 %v1459
        %1506 = vmatprep.subr.mxu0 0.0
        %1507 = vmatpush1.msra.mxu0 %v1458
        %1508 = vmatprep.subr.mxu0 0.0
        %1509 = vmatpush2.msra.mxu0 0.0
        %1510 = vmatprep.subr.mxu0 0.0
        %1511 = vmatpush2.msra.mxu0 0.0
        %1512 = vmatprep.subr.mxu0 0.0
        %1513 = vmatpush2.msra.mxu0 0.0
        %1514 = vmatprep.subr.mxu0 0.0
        %1515 = vmatpush2.msra.mxu0 0.0
        %1516 = vmatprep.subr.mxu0 0.0
        %1517 = vmatpush2.msra.mxu0 0.0
        %1518 = vmatprep.subr.mxu0 0.0
        %1519 = vmatpush2.msra.mxu0 0.0
        %1520 = vmatprep.subr.mxu0 0.0
        %1521 = vmatpush2.msra.mxu0 0.0
        %1522 = vmatprep.subr.mxu0 0.0
        %1523 = vmatpush2.msra.mxu0 0.0
        %1524 = vmatprep.subr.mxu0 0.0
        %1525 = vmatpush2.msra.mxu0 0.0
        %1526 = vmatprep.subr.mxu0 0.0
        %1527 = vmatpush2.msra.mxu0 0.0
        %1528 = vmatprep.subr.mxu0 0.0
        %1529 = vmatpush2.msra.mxu0 0.0
        %1530 = vmatprep.subr.mxu0 0.0
        %1531 = vmatpush2.msra.mxu0 0.0
        %1532 = vmatprep.subr.mxu0 0.0
        %1533 = vmatpush2.msra.mxu0 0.0
        %1534 = vmatprep.subr.mxu0 0.0
        %1535 = vmatpush2.msra.mxu0 0.0
        %1536 = vmatprep.subr.mxu0 0.0
        %1537 = vmatpush2.msra.mxu0 0.0
        %1538 = vmatprep.subr.mxu0 0.0
        %1539 = vmatpush2.msra.mxu0 0.0
        %1540 = vmatprep.mubr.f32.mxu0 0.0
        %1541 = vmatmul.mubr.f32.gmra.mxu0 %v1474
        %v1542 = vpop.f32.mrf.mxu0
        %v1543 = vadd.f32 %v1471, %v1542
        %v1544 = vpop.f32.mrf.mxu0
        %1545 = vdwg.mxu0
        %v1546 = vld [vmem:[%s585] sm:$0xff]
        %v1547 = vadd.f32 %v1543, %v1546
        %v1548 = vld [vmem:[%s8] sm:$0x1]
        %v1549 = vld [vmem:[%s9] sm:$0x1]
        %v1550 = vsel %vm1384, %v1547, 0.0
        %1551 = vadd.xlane.f32.xlu0 %v1550
        %v1552 = vpop.xlane.xlu0 %1551
        %v1553 = vrcp.pop 64.0
        %v1554 = vmul.f32 %v1552, %v1553
        %v1555 = vsub.f32 %v1547, %v1554
        %v1556 = vmul.f32 %v1555, %v1555
        %v1557 = vsel %vm1384, %v1556, 0.0
        %1558 = vadd.xlane.f32.xlu0 %v1557
        %v1559 = vpop.xlane.xlu0 %1558
        %v1560 = vmul.f32 %v1559, %v1553
        %v1561 = vadd.f32 %v1560, 1e-05
        %v1562 = vrsqrt.pop %v1561
        %v1563 = vmul.f32 %v1555, %v1562
        %v1565 = vlaneseq
        %v1566 = vshrl.u32 %v1565, 7
        %v1567 = vsub.s32 0, %v1566
        %v1568 = vrot.slane %v1548, %v1567
        %v1570 = vmul.f32 %v1563, %v1568
        %v1572 = vlaneseq
        %v1573 = vshrl.u32 %v1572, 7
        %v1574 = vsub.s32 0, %v1573
        %v1575 = vrot.slane %v1549, %v1574
        %v1577 = vadd.f32 %v1570, %v1575
        %v1578 = vld [vmem:[%s10] sm:$0xff]
        %v1579 = vld [vmem:[%s10 + $0x8] sm:$0xff]
        %v1580 = vld [vmem:[%s10 + $0x10] sm:$0xff]
        %v1581 = vld [vmem:[%s10 + $0x18] sm:$0xff]
        %v1582 = vld [vmem:[%s10 + $0x20] sm:$0xff]
        %v1583 = vld [vmem:[%s10 + $0x28] sm:$0xff]
        %v1584 = vld [vmem:[%s10 + $0x30] sm:$0xff]
        %v1585 = vld [vmem:[%s10 + $0x38] sm:$0xff]
        %v1586 = vld [vmem:[%s10 + $0x40] sm:$0xff]
        %v1587 = vld [vmem:[%s10 + $0x48] sm:$0xff]
        %v1588 = vld [vmem:[%s10 + $0x50] sm:$0xff]
        %v1589 = vld [vmem:[%s10 + $0x58] sm:$0xff]
        %v1590 = vld [vmem:[%s10 + $0x60] sm:$0xff]
        %v1591 = vld [vmem:[%s10 + $0x68] sm:$0xff]
        %v1592 = vld [vmem:[%s10 + $0x70] sm:$0xff]
        %v1593 = vld [vmem:[%s10 + $0x78] sm:$0xff]
        %v1594 = vld [vmem:[%s11] sm:$0x3]
        %v1596 = vlaneseq
        %v1597 = vshrl.u32 %v1596, 7
        %v1598 = vsub.s32 0, %v1597
        %v1599 = vrot.slane %v1594, %v1598
        %v1600 = vlaneseq
        %v1601 = vshrl.u32 %v1600, 7
        %v1602 = vsub.s32 1, %v1601
        %v1603 = vrot.slane %v1594, %v1602
        %v1607 = vsel %vm1384, %v1577, 0
        %1609 = vmatprep.subr.mxu0 0.0
        %1610 = vmatpush1.msra.mxu0 0.0
        %1611 = vmatprep.subr.mxu0 0.0
        %1612 = vmatpush1.msra.mxu0 0.0
        %1613 = vmatprep.subr.mxu0 0.0
        %1614 = vmatpush1.msra.mxu0 0.0
        %1615 = vmatprep.subr.mxu0 0.0
        %1616 = vmatpush1.msra.mxu0 0.0
        %1617 = vmatprep.subr.mxu0 0.0
        %1618 = vmatpush1.msra.mxu0 0.0
        %1619 = vmatprep.subr.mxu0 0.0
        %1620 = vmatpush1.msra.mxu0 0.0
        %1621 = vmatprep.subr.mxu0 0.0
        %1622 = vmatpush1.msra.mxu0 0.0
        %1623 = vmatprep.subr.mxu0 0.0
        %1624 = vmatpush1.msra.mxu0 0.0
        %1625 = vmatprep.subr.mxu0 %v1593
        %1626 = vmatpush1.msra.mxu0 %v1592
        %1627 = vmatprep.subr.mxu0 %v1591
        %1628 = vmatpush1.msra.mxu0 %v1590
        %1629 = vmatprep.subr.mxu0 %v1589
        %1630 = vmatpush1.msra.mxu0 %v1588
        %1631 = vmatprep.subr.mxu0 %v1587
        %1632 = vmatpush1.msra.mxu0 %v1586
        %1633 = vmatprep.subr.mxu0 %v1585
        %1634 = vmatpush1.msra.mxu0 %v1584
        %1635 = vmatprep.subr.mxu0 %v1583
        %1636 = vmatpush1.msra.mxu0 %v1582
        %1637 = vmatprep.subr.mxu0 %v1581
        %1638 = vmatpush1.msra.mxu0 %v1580
        %1639 = vmatprep.subr.mxu0 %v1579
        %1640 = vmatpush1.msra.mxu0 %v1578
        %1641 = vmatprep.subr.mxu0 0.0
        %1642 = vmatpush2.msra.mxu0 0.0
        %1643 = vmatprep.subr.mxu0 0.0
        %1644 = vmatpush2.msra.mxu0 0.0
        %1645 = vmatprep.subr.mxu0 0.0
        %1646 = vmatpush2.msra.mxu0 0.0
        %1647 = vmatprep.subr.mxu0 0.0
        %1648 = vmatpush2.msra.mxu0 0.0
        %1649 = vmatprep.subr.mxu0 0.0
        %1650 = vmatpush2.msra.mxu0 0.0
        %1651 = vmatprep.subr.mxu0 0.0
        %1652 = vmatpush2.msra.mxu0 0.0
        %1653 = vmatprep.subr.mxu0 0.0
        %1654 = vmatpush2.msra.mxu0 0.0
        %1655 = vmatprep.subr.mxu0 0.0
        %1656 = vmatpush2.msra.mxu0 0.0
        %1657 = vmatprep.subr.mxu0 0.0
        %1658 = vmatpush2.msra.mxu0 0.0
        %1659 = vmatprep.subr.mxu0 0.0
        %1660 = vmatpush2.msra.mxu0 0.0
        %1661 = vmatprep.subr.mxu0 0.0
        %1662 = vmatpush2.msra.mxu0 0.0
        %1663 = vmatprep.subr.mxu0 0.0
        %1664 = vmatpush2.msra.mxu0 0.0
        %1665 = vmatprep.subr.mxu0 0.0
        %1666 = vmatpush2.msra.mxu0 0.0
        %1667 = vmatprep.subr.mxu0 0.0
        %1668 = vmatpush2.msra.mxu0 0.0
        %1669 = vmatprep.subr.mxu0 0.0
        %1670 = vmatpush2.msra.mxu0 0.0
        %1671 = vmatprep.subr.mxu0 0.0
        %1672 = vmatpush2.msra.mxu0 0.0
        %1673 = vmatprep.mubr.f32.mxu0 0.0
        %1674 = vmatmul.mubr.f32.gmra.mxu0 %v1607
        %v1675 = vpop.f32.mrf.mxu0
        %v1676 = vadd.f32 %v1599, %v1675
        %v1677 = vpop.f32.mrf.mxu0
        %v1678 = vadd.f32 %v1603, %v1677
        %1679 = vdwg.mxu0
        %v1680 = vmax.f32 %v1676, 0.0
        %v1681 = vmax.f32 %v1678, 0.0
        %v1682 = vld [vmem:[%s12] sm:$0x3]
        %v1683 = vld [vmem:[%s13] sm:$0x3]
        %v1684 = vadd.f32 %v1680, %v1681
        %1685 = vadd.xlane.f32.xlu0 %v1684
        %v1686 = vpop.xlane.xlu0 %1685
        %v1687 = vrcp.pop 256.0
        %v1688 = vmul.f32 %v1686, %v1687
        %v1689 = vsub.f32 %v1680, %v1688
        %v1690 = vsub.f32 %v1681, %v1688
        %v1691 = vmul.f32 %v1689, %v1689
        %v1692 = vmul.f32 %v1690, %v1690
        %v1693 = vadd.f32 %v1691, %v1692
        %1694 = vadd.xlane.f32.xlu0 %v1693
        %v1695 = vpop.xlane.xlu0 %1694
        %v1696 = vmul.f32 %v1695, %v1687
        %v1697 = vadd.f32 %v1696, 1e-05
        %v1698 = vrsqrt.pop %v1697
        %v1699 = vmul.f32 %v1689, %v1698
        %v1700 = vmul.f32 %v1690, %v1698
        %v1702 = vlaneseq
        %v1703 = vshrl.u32 %v1702, 7
        %v1704 = vsub.s32 0, %v1703
        %v1705 = vrot.slane %v1682, %v1704
        %v1706 = vlaneseq
        %v1707 = vshrl.u32 %v1706, 7
        %v1708 = vsub.s32 1, %v1707
        %v1709 = vrot.slane %v1682, %v1708
        %v1712 = vmul.f32 %v1699, %v1705
        %v1713 = vmul.f32 %v1700, %v1709
        %v1715 = vlaneseq
        %v1716 = vshrl.u32 %v1715, 7
        %v1717 = vsub.s32 0, %v1716
        %v1718 = vrot.slane %v1683, %v1717
        %v1719 = vlaneseq
        %v1720 = vshrl.u32 %v1719, 7
        %v1721 = vsub.s32 1, %v1720
        %v1722 = vrot.slane %v1683, %v1721
        %v1725 = vadd.f32 %v1712, %v1718
        %v1726 = vadd.f32 %v1713, %v1722
        %v1727 = vld [vmem:[%s14] sm:$0xff]
        %v1728 = vld [vmem:[%s14 + $0x8] sm:$0xff]
        %v1729 = vld [vmem:[%s14 + $0x10] sm:$0xff]
        %v1730 = vld [vmem:[%s14 + $0x18] sm:$0xff]
        %v1731 = vld [vmem:[%s14 + $0x20] sm:$0xff]
        %v1732 = vld [vmem:[%s14 + $0x28] sm:$0xff]
        %v1733 = vld [vmem:[%s14 + $0x30] sm:$0xff]
        %v1734 = vld [vmem:[%s14 + $0x38] sm:$0xff]
        %v1735 = vld [vmem:[%s14 + $0x40] sm:$0xff]
        %v1736 = vld [vmem:[%s14 + $0x48] sm:$0xff]
        %v1737 = vld [vmem:[%s14 + $0x50] sm:$0xff]
        %v1738 = vld [vmem:[%s14 + $0x58] sm:$0xff]
        %v1739 = vld [vmem:[%s14 + $0x60] sm:$0xff]
        %v1740 = vld [vmem:[%s14 + $0x68] sm:$0xff]
        %v1741 = vld [vmem:[%s14 + $0x70] sm:$0xff]
        %v1742 = vld [vmem:[%s14 + $0x78] sm:$0xff]
        %v1743 = vld [vmem:[%s14 + $0x80] sm:$0xff]
        %v1744 = vld [vmem:[%s14 + $0x88] sm:$0xff]
        %v1745 = vld [vmem:[%s14 + $0x90] sm:$0xff]
        %v1746 = vld [vmem:[%s14 + $0x98] sm:$0xff]
        %v1747 = vld [vmem:[%s14 + $0xa0] sm:$0xff]
        %v1748 = vld [vmem:[%s14 + $0xa8] sm:$0xff]
        %v1749 = vld [vmem:[%s14 + $0xb0] sm:$0xff]
        %v1750 = vld [vmem:[%s14 + $0xb8] sm:$0xff]
        %v1751 = vld [vmem:[%s14 + $0xc0] sm:$0xff]
        %v1752 = vld [vmem:[%s14 + $0xc8] sm:$0xff]
        %v1753 = vld [vmem:[%s14 + $0xd0] sm:$0xff]
        %v1754 = vld [vmem:[%s14 + $0xd8] sm:$0xff]
        %v1755 = vld [vmem:[%s14 + $0xe0] sm:$0xff]
        %v1756 = vld [vmem:[%s14 + $0xe8] sm:$0xff]
        %v1757 = vld [vmem:[%s14 + $0xf0] sm:$0xff]
        %v1758 = vld [vmem:[%s14 + $0xf8] sm:$0xff]
        %v1759 = vld [vmem:[%s15] sm:$0x1]
        %v1761 = vlaneseq
        %v1762 = vshrl.u32 %v1761, 7
        %v1763 = vsub.s32 0, %v1762
        %v1764 = vrot.slane %v1759, %v1763
        %1766 = vmatprep.subr.mxu0 0.0
        %1767 = vmatpush1.msra.mxu0 %v1742
        %1768 = vmatprep.subr.mxu0 0.0
        %1769 = vmatpush1.msra.mxu0 %v1741
        %1770 = vmatprep.subr.mxu0 0.0
        %1771 = vmatpush1.msra.mxu0 %v1740
        %1772 = vmatprep.subr.mxu0 0.0
        %1773 = vmatpush1.msra.mxu0 %v1739
        %1774 = vmatprep.subr.mxu0 0.0
        %1775 = vmatpush1.msra.mxu0 %v1738
        %1776 = vmatprep.subr.mxu0 0.0
        %1777 = vmatpush1.msra.mxu0 %v1737
        %1778 = vmatprep.subr.mxu0 0.0
        %1779 = vmatpush1.msra.mxu0 %v1736
        %1780 = vmatprep.subr.mxu0 0.0
        %1781 = vmatpush1.msra.mxu0 %v1735
        %1782 = vmatprep.subr.mxu0 0.0
        %1783 = vmatpush1.msra.mxu0 %v1734
        %1784 = vmatprep.subr.mxu0 0.0
        %1785 = vmatpush1.msra.mxu0 %v1733
        %1786 = vmatprep.subr.mxu0 0.0
        %1787 = vmatpush1.msra.mxu0 %v1732
        %1788 = vmatprep.subr.mxu0 0.0
        %1789 = vmatpush1.msra.mxu0 %v1731
        %1790 = vmatprep.subr.mxu0 0.0
        %1791 = vmatpush1.msra.mxu0 %v1730
        %1792 = vmatprep.subr.mxu0 0.0
        %1793 = vmatpush1.msra.mxu0 %v1729
        %1794 = vmatprep.subr.mxu0 0.0
        %1795 = vmatpush1.msra.mxu0 %v1728
        %1796 = vmatprep.subr.mxu0 0.0
        %1797 = vmatpush1.msra.mxu0 %v1727
        %1798 = vmatprep.subr.mxu0 0.0
        %1799 = vmatpush2.msra.mxu0 %v1758
        %1800 = vmatprep.subr.mxu0 0.0
        %1801 = vmatpush2.msra.mxu0 %v1757
        %1802 = vmatprep.subr.mxu0 0.0
        %1803 = vmatpush2.msra.mxu0 %v1756
        %1804 = vmatprep.subr.mxu0 0.0
        %1805 = vmatpush2.msra.mxu0 %v1755
        %1806 = vmatprep.subr.mxu0 0.0
        %1807 = vmatpush2.msra.mxu0 %v1754
        %1808 = vmatprep.subr.mxu0 0.0
        %1809 = vmatpush2.msra.mxu0 %v1753
        %1810 = vmatprep.subr.mxu0 0.0
        %1811 = vmatpush2.msra.mxu0 %v1752
        %1812 = vmatprep.subr.mxu0 0.0
        %1813 = vmatpush2.msra.mxu0 %v1751
        %1814 = vmatprep.subr.mxu0 0.0
        %1815 = vmatpush2.msra.mxu0 %v1750
        %1816 = vmatprep.subr.mxu0 0.0
        %1817 = vmatpush2.msra.mxu0 %v1749
        %1818 = vmatprep.subr.mxu0 0.0
        %1819 = vmatpush2.msra.mxu0 %v1748
        %1820 = vmatprep.subr.mxu0 0.0
        %1821 = vmatpush2.msra.mxu0 %v1747
        %1822 = vmatprep.subr.mxu0 0.0
        %1823 = vmatpush2.msra.mxu0 %v1746
        %1824 = vmatprep.subr.mxu0 0.0
        %1825 = vmatpush2.msra.mxu0 %v1745
        %1826 = vmatprep.subr.mxu0 0.0
        %1827 = vmatpush2.msra.mxu0 %v1744
        %1828 = vmatprep.subr.mxu0 0.0
        %1829 = vmatpush2.msra.mxu0 %v1743
        %1830 = vmatprep.mubr.f32.mxu0 %v1726
        %1831 = vmatmul.mubr.f32.gmra.mxu0 %v1725
        %v1832 = vpop.f32.mrf.mxu0
        %v1833 = vadd.f32 %v1764, %v1832
        %v1834 = vpop.f32.mrf.mxu0
        %1835 = vdwg.mxu0
        %v1836 = vadd.f32 %v1833, %v1577
        %v1837 = vld [vmem:[%s16] sm:$0x1]
        %v1838 = vld [vmem:[%s17] sm:$0x1]
        %v1839 = vsel %vm1384, %v1836, 0.0
        %1840 = vadd.xlane.f32.xlu0 %v1839
        %v1841 = vpop.xlane.xlu0 %1840
        %v1842 = vmul.f32 %v1841, %v1553
        %v1843 = vsub.f32 %v1836, %v1842
        %v1844 = vmul.f32 %v1843, %v1843
        %v1845 = vsel %vm1384, %v1844, 0.0
        %1846 = vadd.xlane.f32.xlu0 %v1845
        %v1847 = vpop.xlane.xlu0 %1846
        %v1848 = vmul.f32 %v1847, %v1553
        %v1849 = vadd.f32 %v1848, 1e-05
        %v1850 = vrsqrt.pop %v1849
        %v1851 = vmul.f32 %v1843, %v1850
        %v1853 = vlaneseq
        %v1854 = vshrl.u32 %v1853, 7
        %v1855 = vsub.s32 0, %v1854
        %v1856 = vrot.slane %v1837, %v1855
        %v1858 = vmul.f32 %v1851, %v1856
        %v1860 = vlaneseq
        %v1861 = vshrl.u32 %v1860, 7
        %v1862 = vsub.s32 0, %v1861
        %v1863 = vrot.slane %v1838, %v1862
        %v1865 = vadd.f32 %v1858, %v1863
        %1866 = vst.msk [vmem:[%s581] sm:$0xff] %vm1384, %v1865
        %s1867 = sand.u32 %s428, 1
        %s1868 = scalar_lea.sflag [#allocation3], %s1867
        %s1869 = sand.u32 %s428, 1
        %s1870 = smul.addr %s1869, 8
        %s1871 = scalar_lea.vmem [#allocation2], %s1870
        // Predicated region
        $region93: #{conv_transformer_encoder_layer.1} parent=91 // pred_check
          %p1872 = pneg %p438
        $region94: #{conv_transformer_encoder_layer.1} parent=91 // pred_check_branch
          %1874 = sbr.rel (%p1872) target = $region96
        $region95: #{conv_transformer_encoder_layer.1} parent=91 // pred_region
          %s1876 = ssub.s32 128, 128
          %1877 = vsyncadd %s1868, %s1876
          %s1878 = smul.addr %s32, 128
          %s1879 = scalar_lea.hbm %s18, %s1878
          %s1881 = sshll.u32 %s1871, 4
          %s1882 = int_to_ptr.vmem [resolvable:$true] %s1881
          %1884 = dma.vmem_to_hbm [thread:$0]  %s1882, 128, %s1879, %s1868
        $region96: #{conv_transformer_encoder_layer.1} parent=91 // pred_fallthru
          _
      $region92: #{conv_transformer_encoder_layer.1} parent=5 // pred_fallthru
        _
      %p1885 = scmp.le.s32.totalorder 2, %s27
      // Predicated region
      $region97: #{conv_transformer_encoder_layer.1} parent=5 // pred_check
        %p1886 = pneg %p1885
      $region98: #{conv_transformer_encoder_layer.1} parent=5 // pred_check_branch
        %1888 = sbr.rel (%p1886) target = $region100
      $region99: #{conv_transformer_encoder_layer.1} parent=5 // pred_region
        %s1889 = ssub.s32 %s27, 2
        // Predicated region
        $region101: #{conv_transformer_encoder_layer.1} parent=99 // pred_check
          %p1890 = pneg %p444
        $region102: #{conv_transformer_encoder_layer.1} parent=99 // pred_check_branch
          %1892 = sbr.rel (%p1890) target = $region104
        $region103: #{conv_transformer_encoder_layer.1} parent=99 // pred_region
          %s1893 = sand.u32 %s429, 1
          %s1894 = scalar_lea.sflag [#allocation3], %s1893
          %s1895 = sand.u32 %s429, 1
          %s1896 = smul.addr %s1895, 8
          %s1897 = scalar_lea.vmem [#allocation2], %s1896
          %1898 = dma.done %s1894, 128
        $region104: #{conv_transformer_encoder_layer.1} parent=99 // pred_fallthru
          _
      $region100: #{conv_transformer_encoder_layer.1} parent=5 // pred_fallthru
        _
    $region6: #{conv_transformer_encoder_layer.1} parent=1 // loop_footer
      %s31 = sadd.s32 1, %s27
    $region7: #{conv_transformer_encoder_layer.1} parent=1 // loop_footer_branch
      %26 = sbr.rel target = $region3
    $region8: #{conv_transformer_encoder_layer.1} parent=1 // loop_exit
      _
    %1899 = vsyncpa [#allocation3], 1
    %s1900 = scalar_lea.sflag [#allocation3], 1
    %1901 = vsyncpa %s1900, 1

</llo_original>
